<compile_context>
chip_gen: v7x
topology: tpu7x:2x2x1
jax: 0.10.0
libtpu: 0.0.40
codegen_flags: <defaults>
</compile_context>

<pallas_src>
import functools

import jax
import jax.numpy as jnp
from jax.experimental import pallas as pl
from jax.experimental.pallas import tpu as pltpu


def _decoder_kernel(emb_ref, hid_ref, enc_ref, mask_ref,
                    wattn_ref, wgru_ref, wfc_ref, bias_ref,
                    pred_ref, hnew_ref, *, S, B, H, O):
    f32, bf16 = jnp.float32, jnp.bfloat16

    emb = emb_ref[...]        # (B, H)    f32   embedded token (post-dropout)
    hid = hid_ref[...]        # (B, H)    f32   previous decoder hidden state
    enc = enc_ref[...]        # (S, B, H) f32   encoder outputs, native seq-major layout
    mask = mask_ref[...]      # (S, B)    int32 (0 = masked position)

    # bias / vector slab rows: [b_attn, v, b_ih, b_hh, b_fc]
    b_attn = bias_ref[0:1, 0:H]          # (1, H)
    v_vec = bias_ref[1:2, 0:H]           # (1, H)
    b_ih = bias_ref[2:3, 0:3 * H]        # (1, 3H)
    b_hh = bias_ref[3:4, 0:3 * H]        # (1, 3H)
    b_fc = bias_ref[4:5, 0:O]            # (1, O)

    # ---------------- Attention (single fused matmul, K = 2H) ----------------
    enc_flat = enc.reshape(S * B, H)                                       # free leading-dim collapse
    hid_rep = jnp.broadcast_to(hid[None, :, :], (S, B, H)).reshape(S * B, H)
    attn_in = jnp.concatenate([hid_rep, enc_flat], axis=1).astype(bf16)    # (S*B, 2H)
    energy = jnp.tanh(
        jnp.dot(attn_in, wattn_ref[...], preferred_element_type=f32) + b_attn)   # (S*B, H) f32

    # scores = energy @ v  (kept on the VPU as a lane reduction; MXU N=1 would be wasteful)
    scores = jnp.sum(energy.reshape(S, B, H) * v_vec[None, :, :], axis=-1)  # (S, B)
    scores = jnp.where(mask == 0, jnp.float32(-1e10), scores)

    # masked softmax over the source length (seq axis = 0 in this orientation)
    s_max = jnp.max(scores, axis=0, keepdims=True)                          # (1, B)
    s_exp = jnp.exp(scores - s_max)
    denom = jnp.sum(s_exp, axis=0, keepdims=True)                           # (1, B)
    attn = s_exp * pl.reciprocal(denom, approx=True)                        # (S, B)

    # weighted context = sum_s attn[s, b] * enc[s, b, :]
    weighted = jnp.sum(attn[:, :, None] * enc, axis=0)                      # (B, H) f32

    # ---------------- GRU cell (single layer, single step) ----------------
    gi_in = jnp.concatenate([emb, weighted], axis=1).astype(bf16)           # (B, 2H)
    gi = jnp.dot(gi_in, wgru_ref[0:2 * H, :],
                 preferred_element_type=f32) + b_ih                         # (B, 3H)
    gh = jnp.dot(hid.astype(bf16), wgru_ref[2 * H:3 * H, :],
                 preferred_element_type=f32) + b_hh                         # (B, 3H)

    r = jax.nn.sigmoid(gi[:, 0:H] + gh[:, 0:H])
    z = jax.nn.sigmoid(gi[:, H:2 * H] + gh[:, H:2 * H])
    n = jnp.tanh(gi[:, 2 * H:3 * H] + r * gh[:, 2 * H:3 * H])
    h_new = (1.0 - z) * n + z * hid                                         # (B, H) f32

    # ---------------- Output head (single fused matmul, K = 3H) ----------------
    fc_in = jnp.concatenate([h_new, weighted, emb], axis=1).astype(bf16)    # (B, 3H)
    logits = jnp.dot(fc_in, wfc_ref[...], preferred_element_type=f32) + b_fc  # (B, O)
    l_max = jnp.max(logits, axis=1, keepdims=True)
    l_exp = jnp.exp(logits - l_max)
    pred = l_exp * pl.reciprocal(jnp.sum(l_exp, axis=1, keepdims=True), approx=True)

    pred_ref[...] = pred
    hnew_ref[...] = h_new


def init_params(key, hidden_dim, output_dim):
    """Master f32 parameters in a PyTorch-like (transposed) layout."""
    H, O = hidden_dim, output_dim
    ks = jax.random.split(key, 10)
    s = 0.1
    return {
        "embedding": s * jax.random.normal(ks[0], (O, H), jnp.float32),
        # attention: Linear(2H -> H), input order [hidden ; encoder], already transposed
        "W_attn": s * jax.random.normal(ks[1], (2 * H, H), jnp.float32),
        "b_attn": s * jax.random.normal(ks[2], (H,), jnp.float32),
        "v": s * jax.random.normal(ks[3], (H,), jnp.float32),           # Linear(H -> 1), no bias
        # GRU(2H -> H): W_ih^T, input order [embedded ; weighted], gates ordered [r, z, n]
        "W_ih": s * jax.random.normal(ks[4], (2 * H, 3 * H), jnp.float32),
        "b_ih": s * jax.random.normal(ks[5], (3 * H,), jnp.float32),
        "W_hh": s * jax.random.normal(ks[6], (H, 3 * H), jnp.float32),
        "b_hh": s * jax.random.normal(ks[7], (3 * H,), jnp.float32),
        # fc_out: Linear(3H -> O), input order [output ; weighted ; embedded], transposed
        "W_fc": s * jax.random.normal(ks[8], (3 * H, O), jnp.float32),
        "b_fc": s * jax.random.normal(ks[9], (O,), jnp.float32),
    }


def pack_params(params):
    """One-time packing of weights into bf16 MXU slabs + a single f32 bias/vector slab."""
    H = params["W_hh"].shape[0]
    O = params["W_fc"].shape[1]
    W = max(3 * H, O)
    bias = jnp.zeros((5, W), jnp.float32)
    bias = bias.at[0, :H].set(params["b_attn"])
    bias = bias.at[1, :H].set(params["v"])
    bias = bias.at[2, :3 * H].set(params["b_ih"])
    bias = bias.at[3, :3 * H].set(params["b_hh"])
    bias = bias.at[4, :O].set(params["b_fc"])
    return {
        "embedding": params["embedding"],                                              # (O, H) f32
        "W_attn": params["W_attn"].astype(jnp.bfloat16),                               # (2H, H)
        "W_gru": jnp.concatenate([params["W_ih"], params["W_hh"]], axis=0).astype(jnp.bfloat16),  # (3H, 3H)
        "W_fc": params["W_fc"].astype(jnp.bfloat16),                                   # (3H, O)
        "bias": bias,                                                                  # (5, max(3H, O)) f32
    }


def _attn_decoder_forward(input_step, hidden, encoder_outputs, mask, packed):
    """Pallas-backed forward matching AttnDecoderRNN2.forward (eval mode: dropout = identity)."""
    # TODO(synk): the embedding row gather stays here (fused by XLA under jit); it could be
    #             moved in-kernel via PrefetchScalarGridSpec scalar-prefetch token ids.
    emb = packed["embedding"][input_step[0]]                   # (B, H) f32
    hid = hidden[0]                                            # (B, H) f32
    mask_t = mask.astype(jnp.int32).T                          # (S, B) to match seq-major kernel

    S, B, H = encoder_outputs.shape
    O = packed["W_fc"].shape[-1]

    inputs = (emb, hid, encoder_outputs, mask_t,
              packed["W_attn"], packed["W_gru"], packed["W_fc"], packed["bias"])

    pred, h_new = pl.pallas_call(
        functools.partial(_decoder_kernel, S=S, B=B, H=H, O=O),
        out_shape=(jax.ShapeDtypeStruct((B, O), jnp.float32),
                   jax.ShapeDtypeStruct((B, H), jnp.float32)),
        in_specs=[pl.BlockSpec(memory_space=pltpu.MemorySpace.VMEM)] * len(inputs),
        out_specs=(pl.BlockSpec(memory_space=pltpu.MemorySpace.VMEM),
                   pl.BlockSpec(memory_space=pltpu.MemorySpace.VMEM)),
        input_output_aliases={1: 1},    # previous hidden buffer reused for the new hidden state
    )(*inputs)

    return pred, h_new[None]                                   # hidden back to (1, B, H)


attn_decoder_forward = jax.jit(_attn_decoder_forward)


def attn_decoder_forward_ref(input_step, hidden, encoder_outputs, mask, params):
    """Pure-JAX f32 reference (mirrors the PyTorch module) for correctness checking."""
    H = hidden.shape[-1]
    emb = params["embedding"][input_step[0]]                   # (B, H)
    hid = hidden[0]                                            # (B, H)
    enc = jnp.transpose(encoder_outputs, (1, 0, 2))            # (B, S, H)

    hid_rep = jnp.broadcast_to(hid[:, None, :], enc.shape)     # (B, S, H)
    cat = jnp.concatenate([hid_rep, enc], axis=2)              # (B, S, 2H)
    energy = jnp.tanh(cat @ params["W_attn"] + params["b_attn"])
    scores = jnp.einsum("bsh,h->bs", energy, params["v"])
    scores = jnp.where(mask == 0, -1e10, scores)
    attn = jax.nn.softmax(scores, axis=1)
    weighted = jnp.einsum("bs,bsh->bh", attn, enc)

    gi = jnp.concatenate([emb, weighted], axis=1) @ params["W_ih"] + params["b_ih"]
    gh = hid @ params["W_hh"] + params["b_hh"]
    r = jax.nn.sigmoid(gi[:, :H] + gh[:, :H])
    z = jax.nn.sigmoid(gi[:, H:2 * H] + gh[:, H:2 * H])
    n = jnp.tanh(gi[:, 2 * H:] + r * gh[:, 2 * H:])
    h_new = (1 - z) * n + z * hid

    logits = jnp.concatenate([h_new, weighted, emb], axis=1) @ params["W_fc"] + params["b_fc"]
    return jax.nn.softmax(logits, axis=1), h_new[None]


if __name__ == "__main__":
    # Lane/sublane-dense sizing: batch=8 (full sublanes), hidden=128, vocab=256 (full lanes),
    # src_len=10 (module's default max_length).
    B, S, H, O = 8, 10, 128, 256

    key = jax.random.PRNGKey(0)
    kp, k1, k2, k3, k4 = jax.random.split(key, 5)
    params = init_params(kp, H, O)
    packed = pack_params(params)            # one-time bf16 weight packing

    input_step = jax.random.randint(k1, (1, B), 0, O, dtype=jnp.int32)        # (1, B)
    hidden = 0.1 * jax.random.normal(k2, (1, B, H), jnp.float32)              # (1, B, H)
    encoder_outputs = 0.1 * jax.random.normal(k3, (S, B, H), jnp.float32)     # (S, B, H)
    lengths = jax.random.randint(k4, (B,), 1, S + 1, dtype=jnp.int32)
    mask = (jnp.arange(S)[None, :] < lengths[:, None]).astype(jnp.int32)      # (B, S)

    pred, h_new = attn_decoder_forward(input_step, hidden, encoder_outputs, mask, packed)
    pred = jax.block_until_ready(pred)
    h_new = jax.block_until_ready(h_new)

    pred_ref, h_ref = attn_decoder_forward_ref(input_step, hidden, encoder_outputs, mask, params)
    assert pred.shape == (B, O) and h_new.shape == (1, B, H)
    assert jnp.allclose(pred, pred_ref, atol=5e-3, rtol=5e-3)
    assert jnp.allclose(h_new, h_ref, atol=5e-3, rtol=5e-3)
    assert jnp.allclose(jnp.sum(pred, axis=1), 1.0, atol=5e-3)

    print("KERNEL_OK")
</pallas_src>

<mosaic_0001>
module attributes {stable_mosaic.version = 11 : i64} {
  func.func @_decoder_kernel(%arg0: memref<8x128xf32, #tpu.memory_space<vmem>>, %arg1: memref<8x128xf32, #tpu.memory_space<vmem>>, %arg2: memref<10x8x128xf32, #tpu.memory_space<vmem>>, %arg3: memref<10x8xi32, #tpu.memory_space<vmem>>, %arg4: memref<256x128xbf16, #tpu.memory_space<vmem>>, %arg5: memref<384x384xbf16, #tpu.memory_space<vmem>>, %arg6: memref<384x256xbf16, #tpu.memory_space<vmem>>, %arg7: memref<5x384xf32, #tpu.memory_space<vmem>>, %arg8: memref<8x256xf32, #tpu.memory_space<vmem>>, %arg9: memref<8x128xf32, #tpu.memory_space<vmem>>) attributes {dimension_semantics = [], scalar_prefetch = 0 : i64, scratch_operands = 0 : i64, tpu.core_type = #tpu.core_type<tc>} {
    %c0 = arith.constant 0 : index
    %c0_0 = arith.constant 0 : index
    %0 = vector.load %arg0[%c0, %c0_0] : memref<8x128xf32, #tpu.memory_space<vmem>>, vector<8x128xf32>
    %c0_1 = arith.constant 0 : index
    %c0_2 = arith.constant 0 : index
    %1 = vector.load %arg1[%c0_1, %c0_2] : memref<8x128xf32, #tpu.memory_space<vmem>>, vector<8x128xf32>
    %c0_3 = arith.constant 0 : index
    %c0_4 = arith.constant 0 : index
    %c0_5 = arith.constant 0 : index
    %2 = vector.load %arg2[%c0_3, %c0_4, %c0_5] : memref<10x8x128xf32, #tpu.memory_space<vmem>>, vector<10x8x128xf32>
    %c0_6 = arith.constant 0 : index
    %c0_7 = arith.constant 0 : index
    %3 = vector.load %arg3[%c0_6, %c0_7] : memref<10x8xi32, #tpu.memory_space<vmem>>, vector<10x8xi32>
    %c0_8 = arith.constant 0 : index
    %c0_9 = arith.constant 0 : index
    %4 = vector.load %arg7[%c0_8, %c0_9] : memref<5x384xf32, #tpu.memory_space<vmem>>, vector<1x128xf32>
    %c1 = arith.constant 1 : index
    %c0_10 = arith.constant 0 : index
    %5 = vector.load %arg7[%c1, %c0_10] : memref<5x384xf32, #tpu.memory_space<vmem>>, vector<1x128xf32>
    %c2 = arith.constant 2 : index
    %c0_11 = arith.constant 0 : index
    %6 = vector.load %arg7[%c2, %c0_11] : memref<5x384xf32, #tpu.memory_space<vmem>>, vector<1x384xf32>
    %c3 = arith.constant 3 : index
    %c0_12 = arith.constant 0 : index
    %7 = vector.load %arg7[%c3, %c0_12] : memref<5x384xf32, #tpu.memory_space<vmem>>, vector<1x384xf32>
    %c4 = arith.constant 4 : index
    %c0_13 = arith.constant 0 : index
    %8 = vector.load %arg7[%c4, %c0_13] : memref<5x384xf32, #tpu.memory_space<vmem>>, vector<1x256xf32>
    %9 = vector.shape_cast %2 : vector<10x8x128xf32> to vector<80x128xf32>
    %10 = vector.shape_cast %1 : vector<8x128xf32> to vector<1x8x128xf32>
    %11 = vector.shape_cast %10 : vector<1x8x128xf32> to vector<1x8x128xf32>
    %12 = vector.broadcast %11 : vector<1x8x128xf32> to vector<10x8x128xf32>
    %13 = vector.shape_cast %12 : vector<10x8x128xf32> to vector<80x128xf32>
    %14 = tpu.concatenate %13, %9 in 1 : vector<80x128xf32>, vector<80x128xf32> -> vector<80x256xf32>
    %15 = arith.truncf %14 : vector<80x256xf32> to vector<80x256xbf16>
    %c0_14 = arith.constant 0 : index
    %c0_15 = arith.constant 0 : index
    %16 = vector.load %arg4[%c0_14, %c0_15] : memref<256x128xbf16, #tpu.memory_space<vmem>>, vector<256x128xbf16>
    %cst = arith.constant dense<0.000000e+00> : vector<80x128xf32>
    %17 = tpu.matmul %15, %16, %cst {dimension_numbers = #tpu.dot_dimension_numbers<[1], [0], [0], [1], [0, 0, 1, 1], [], []>} : vector<80x256xbf16>, vector<256x128xbf16>, vector<80x128xf32> -> vector<80x128xf32>
    %18 = vector.broadcast %4 : vector<1x128xf32> to vector<80x128xf32>
    %19 = arith.addf %17, %18 : vector<80x128xf32>
    %20 = math.tanh %19 : vector<80x128xf32>
    %21 = vector.shape_cast %20 : vector<80x128xf32> to vector<10x8x128xf32>
    %22 = vector.shape_cast %5 : vector<1x128xf32> to vector<1x1x128xf32>
    %23 = vector.broadcast %22 : vector<1x1x128xf32> to vector<10x8x128xf32>
    %24 = arith.mulf %21, %23 : vector<10x8x128xf32>
    %cst_16 = arith.constant dense<0.000000e+00> : vector<10x8xf32>
    %25 = vector.multi_reduction <add>, %24, %cst_16 [2] : vector<10x8x128xf32> to vector<10x8xf32>
    %c0_i32 = arith.constant 0 : i32
    %26 = vector.broadcast %c0_i32 : i32 to vector<10x8xi32>
    %27 = arith.cmpi eq, %3, %26 : vector<10x8xi32>
    %cst_17 = arith.constant -1.000000e+10 : f32
    %28 = vector.broadcast %cst_17 : f32 to vector<10x8xf32>
    %29 = arith.select %27, %28, %25 : vector<10x8xi1>, vector<10x8xf32>
    %cst_18 = arith.constant dense<0xFF800000> : vector<8xf32>
    %30 = vector.multi_reduction <maximumf>, %29, %cst_18 [0] : vector<10x8xf32> to vector<8xf32>
    %31 = vector.shape_cast %30 : vector<8xf32> to vector<1x8xf32>
    %32 = vector.broadcast %31 : vector<1x8xf32> to vector<10x8xf32>
    %33 = arith.subf %29, %32 : vector<10x8xf32>
    %34 = math.exp %33 : vector<10x8xf32>
    %cst_19 = arith.constant dense<0.000000e+00> : vector<8xf32>
    %35 = vector.multi_reduction <add>, %34, %cst_19 [0] : vector<10x8xf32> to vector<8xf32>
    %36 = vector.shape_cast %35 : vector<8xf32> to vector<1x8xf32>
    %37 = tpu.reciprocal %36 {approx = true} : vector<1x8xf32> -> vector<1x8xf32>
    %38 = vector.broadcast %37 : vector<1x8xf32> to vector<10x8xf32>
    %39 = arith.mulf %34, %38 : vector<10x8xf32>
    %40 = vector.shape_cast %39 : vector<10x8xf32> to vector<10x8x1xf32>
    %41 = vector.broadcast %40 : vector<10x8x1xf32> to vector<10x8x128xf32>
    %42 = arith.mulf %41, %2 : vector<10x8x128xf32>
    %cst_20 = arith.constant dense<0.000000e+00> : vector<8x128xf32>
    %43 = vector.multi_reduction <add>, %42, %cst_20 [0] : vector<10x8x128xf32> to vector<8x128xf32>
    %44 = tpu.concatenate %0, %43 in 1 : vector<8x128xf32>, vector<8x128xf32> -> vector<8x256xf32>
    %45 = arith.truncf %44 : vector<8x256xf32> to vector<8x256xbf16>
    %c0_21 = arith.constant 0 : index
    %c0_22 = arith.constant 0 : index
    %46 = vector.load %arg5[%c0_21, %c0_22] : memref<384x384xbf16, #tpu.memory_space<vmem>>, vector<256x384xbf16>
    %cst_23 = arith.constant dense<0.000000e+00> : vector<8x384xf32>
    %47 = tpu.matmul %45, %46, %cst_23 {dimension_numbers = #tpu.dot_dimension_numbers<[1], [0], [0], [1], [0, 0, 1, 1], [], []>} : vector<8x256xbf16>, vector<256x384xbf16>, vector<8x384xf32> -> vector<8x384xf32>
    %48 = vector.broadcast %6 : vector<1x384xf32> to vector<8x384xf32>
    %49 = arith.addf %47, %48 : vector<8x384xf32>
    %50 = arith.truncf %1 : vector<8x128xf32> to vector<8x128xbf16>
    %c256 = arith.constant 256 : index
    %c0_24 = arith.constant 0 : index
    %51 = vector.load %arg5[%c256, %c0_24] : memref<384x384xbf16, #tpu.memory_space<vmem>>, vector<128x384xbf16>
    %cst_25 = arith.constant dense<0.000000e+00> : vector<8x384xf32>
    %52 = tpu.matmul %50, %51, %cst_25 {dimension_numbers = #tpu.dot_dimension_numbers<[1], [0], [0], [1], [0, 0, 1, 1], [], []>} : vector<8x128xbf16>, vector<128x384xbf16>, vector<8x384xf32> -> vector<8x384xf32>
    %53 = vector.broadcast %7 : vector<1x384xf32> to vector<8x384xf32>
    %54 = arith.addf %52, %53 : vector<8x384xf32>
    %55 = vector.extract_strided_slice %49 {offsets = [0, 0], sizes = [8, 128], strides = [1, 1]} : vector<8x384xf32> to vector<8x128xf32>
    %56 = vector.extract_strided_slice %54 {offsets = [0, 0], sizes = [8, 128], strides = [1, 1]} : vector<8x384xf32> to vector<8x128xf32>
    %57 = arith.addf %55, %56 : vector<8x128xf32>
    %58 = arith.negf %57 : vector<8x128xf32>
    %59 = math.exp %58 : vector<8x128xf32>
    %cst_26 = arith.constant 1.000000e+00 : f32
    %60 = vector.broadcast %cst_26 : f32 to vector<8x128xf32>
    %61 = arith.addf %60, %59 : vector<8x128xf32>
    %62 = arith.divf %60, %61 : vector<8x128xf32>
    %63 = vector.extract_strided_slice %49 {offsets = [0, 128], sizes = [8, 128], strides = [1, 1]} : vector<8x384xf32> to vector<8x128xf32>
    %64 = vector.extract_strided_slice %54 {offsets = [0, 128], sizes = [8, 128], strides = [1, 1]} : vector<8x384xf32> to vector<8x128xf32>
    %65 = arith.addf %63, %64 : vector<8x128xf32>
    %66 = arith.negf %65 : vector<8x128xf32>
    %67 = math.exp %66 : vector<8x128xf32>
    %cst_27 = arith.constant 1.000000e+00 : f32
    %68 = vector.broadcast %cst_27 : f32 to vector<8x128xf32>
    %69 = arith.addf %68, %67 : vector<8x128xf32>
    %70 = arith.divf %68, %69 : vector<8x128xf32>
    %71 = vector.extract_strided_slice %49 {offsets = [0, 256], sizes = [8, 128], strides = [1, 1]} : vector<8x384xf32> to vector<8x128xf32>
    %72 = vector.extract_strided_slice %54 {offsets = [0, 256], sizes = [8, 128], strides = [1, 1]} : vector<8x384xf32> to vector<8x128xf32>
    %73 = arith.mulf %62, %72 : vector<8x128xf32>
    %74 = arith.addf %71, %73 : vector<8x128xf32>
    %75 = math.tanh %74 : vector<8x128xf32>
    %cst_28 = arith.constant 1.000000e+00 : f32
    %76 = vector.broadcast %cst_28 : f32 to vector<8x128xf32>
    %77 = arith.subf %76, %70 : vector<8x128xf32>
    %78 = arith.mulf %77, %75 : vector<8x128xf32>
    %79 = arith.mulf %70, %1 : vector<8x128xf32>
    %80 = arith.addf %78, %79 : vector<8x128xf32>
    %81 = tpu.concatenate %80, %43, %0 in 1 : vector<8x128xf32>, vector<8x128xf32>, vector<8x128xf32> -> vector<8x384xf32>
    %82 = arith.truncf %81 : vector<8x384xf32> to vector<8x384xbf16>
    %c0_29 = arith.constant 0 : index
    %c0_30 = arith.constant 0 : index
    %83 = vector.load %arg6[%c0_29, %c0_30] : memref<384x256xbf16, #tpu.memory_space<vmem>>, vector<384x256xbf16>
    %cst_31 = arith.constant dense<0.000000e+00> : vector<8x256xf32>
    %84 = tpu.matmul %82, %83, %cst_31 {dimension_numbers = #tpu.dot_dimension_numbers<[1], [0], [0], [1], [0, 0, 1, 1], [], []>} : vector<8x384xbf16>, vector<384x256xbf16>, vector<8x256xf32> -> vector<8x256xf32>
    %85 = vector.broadcast %8 : vector<1x256xf32> to vector<8x256xf32>
    %86 = arith.addf %84, %85 : vector<8x256xf32>
    %cst_32 = arith.constant dense<0xFF800000> : vector<8xf32>
    %87 = vector.multi_reduction <maximumf>, %86, %cst_32 [1] : vector<8x256xf32> to vector<8xf32>
    %88 = vector.shape_cast %87 : vector<8xf32> to vector<8x1xf32>
    %89 = vector.broadcast %88 : vector<8x1xf32> to vector<8x256xf32>
    %90 = arith.subf %86, %89 : vector<8x256xf32>
    %91 = math.exp %90 : vector<8x256xf32>
    %cst_33 = arith.constant dense<0.000000e+00> : vector<8xf32>
    %92 = vector.multi_reduction <add>, %91, %cst_33 [1] : vector<8x256xf32> to vector<8xf32>
    %93 = vector.shape_cast %92 : vector<8xf32> to vector<8x1xf32>
    %94 = tpu.reciprocal %93 {approx = true} : vector<8x1xf32> -> vector<8x1xf32>
    %95 = vector.broadcast %94 : vector<8x1xf32> to vector<8x256xf32>
    %96 = arith.mulf %91, %95 : vector<8x256xf32>
    %c0_34 = arith.constant 0 : index
    %c0_35 = arith.constant 0 : index
    %97 = vector.load %arg8[%c0_34, %c0_35] : memref<8x256xf32, #tpu.memory_space<vmem>>, vector<8x256xf32>
    tpu.vector_store %arg8[%c0_34, %c0_35], %96 {strides = array<i32>} : memref<8x256xf32, #tpu.memory_space<vmem>>, vector<8x256xf32>,
    %c0_36 = arith.constant 0 : index
    %c0_37 = arith.constant 0 : index
    %98 = vector.load %arg9[%c0_36, %c0_37] : memref<8x128xf32, #tpu.memory_space<vmem>>, vector<8x128xf32>
    tpu.vector_store %arg9[%c0_36, %c0_37], %80 {strides = array<i32>} : memref<8x128xf32, #tpu.memory_space<vmem>>, vector<8x128xf32>,
    return
  }
}

</mosaic_0001>

<llo_original>
// kernel: _attn_decoder_forward.1
$region0: #{_attn_decoder_forward.1}
  #allocation0 [shape = 'u32[]', space=smem, size = 0x4, offset = 0x4, fixed_abs, tag = 'smem constant byte address 0x4 - core index']
  #allocation1 [shape = 'u32[144,128]{1,0:T(1,128)}', space=vmem, size = 0x12000, scoped, tag = 'internal scratch']
  %s0 = inlined_call_operand.vmem [shape: f32[8,128], index: 0, kind: input, shape index: {}]
  %s1 = inlined_call_operand.vmem [shape: f32[8,128], index: 1, kind: input, shape index: {}, may-alias: {1,9}]
  %s2 = inlined_call_operand.hbm [shape: f32[10,8,128], index: 2, kind: input, shape index: {}]
  %s3 = inlined_call_operand.vmem [shape: s32[10,8], index: 3, kind: input, shape index: {}]
  %s4 = inlined_call_operand.vmem [shape: bf16[256,128], index: 4, kind: input, shape index: {}]
  %s5 = inlined_call_operand.hbm [shape: bf16[384,384], index: 5, kind: input, shape index: {}]
  %s6 = inlined_call_operand.hbm [shape: bf16[384,256], index: 6, kind: input, shape index: {}]
  %s7 = inlined_call_operand.hbm [shape: f32[5,384], index: 7, kind: input, shape index: {}]
  %s8 = inlined_call_operand.hbm [shape: f32[8,256], index: 8, kind: output, shape index: {0}]
  %s9 = inlined_call_operand.vmem [shape: f32[8,128], index: 9, kind: output, shape index: {1}, may-alias: {1,9}]
  %10 = xla_tuple %s8, %s9
  %s11 = sld [smem:[#allocation0]]
  $region66: #{_attn_decoder_forward.1} parent=0
    _
  %s13 = ssub.s32 1, %s11
  %s14 = scalar_select 0, %s13, %s11
  $region1: #{_attn_decoder_forward.1} parent=0
    #allocation2 [shape = 'u8[40960]{0}', space=vmem, size = 0xa000, scoped, tag = 'input window, operand 2, single buffered']
    #allocation3 [shape = 's32[1]{0}', space=sflag, size = 0x4, scoped, tag = 'scoped memory for _attn_decoder_forward.1']
    #allocation4 [shape = 's32[1]{0}', space=sflag, size = 0x4, scoped, tag = 'scoped memory for _attn_decoder_forward.1']
    #allocation5 [shape = 'u8[294912]{0}', space=vmem, size = 0x48000, scoped, tag = 'input window, operand 5, single buffered']
    #allocation6 [shape = 's32[1]{0}', space=sflag, size = 0x4, scoped, tag = 'scoped memory for _attn_decoder_forward.1']
    #allocation7 [shape = 'u8[196608]{0}', space=vmem, size = 0x30000, scoped, tag = 'input window, operand 6, single buffered']
    #allocation8 [shape = 'u8[12288]{0}', space=vmem, size = 0x3000, scoped, tag = 'input window, operand 7, single buffered']
    #allocation9 [shape = 's32[1]{0}', space=sflag, size = 0x4, scoped, tag = 'scoped memory for _attn_decoder_forward.1']
    #allocation10 [shape = 'u8[8192]{0}', space=vmem, size = 0x2000, scoped, tag = 'output window, operand 0, single buffered']
    %15 = vsyncpa [#allocation3], 0
    %16 = vsyncpa [#allocation6], 0
    %17 = vsyncpa [#allocation9], 0
    %18 = vsyncpa [#allocation4], 0
    // Predicated region
    $region2: #{_attn_decoder_forward.1} parent=1 // pred_check
      _
    $region3: #{_attn_decoder_forward.1} parent=1 // pred_check_branch
      %20 = sbr.rel (0) target = $region5
    $region4: #{_attn_decoder_forward.1} parent=1 // pred_region
      _
    $region5: #{_attn_decoder_forward.1} parent=1 // pred_fallthru
      _
    // Predicated region
    $region6: #{_attn_decoder_forward.1} parent=1 // pred_check
      _
    $region7: #{_attn_decoder_forward.1} parent=1 // pred_check_branch
      %22 = sbr.rel (0) target = $region9
    $region8: #{_attn_decoder_forward.1} parent=1 // pred_region
      _
    $region9: #{_attn_decoder_forward.1} parent=1 // pred_fallthru
      _
    // Predicated region
    $region10: #{_attn_decoder_forward.1} parent=1 // pred_check
      _
    $region11: #{_attn_decoder_forward.1} parent=1 // pred_check_branch
      %24 = sbr.rel (0) target = $region13
    $region12: #{_attn_decoder_forward.1} parent=1 // pred_region
      %s26 = ssub.s32 1280, 1280
      %27 = vsyncadd [#allocation3], %s26
      %s28 = sshll.u32 [#allocation2], 4
      %s29 = int_to_ptr.vmem [resolvable:$true] %s28
      %34 = dma.hbm_to_vmem [thread:$0]  %s2, 1280, %s29, [#allocation3], 128, 128, 8
    $region13: #{_attn_decoder_forward.1} parent=1 // pred_fallthru
      _
    // Predicated region
    $region14: #{_attn_decoder_forward.1} parent=1 // pred_check
      _
    $region15: #{_attn_decoder_forward.1} parent=1 // pred_check_branch
      %36 = sbr.rel (0) target = $region17
    $region16: #{_attn_decoder_forward.1} parent=1 // pred_region
      _
    $region17: #{_attn_decoder_forward.1} parent=1 // pred_fallthru
      _
    // Predicated region
    $region18: #{_attn_decoder_forward.1} parent=1 // pred_check
      _
    $region19: #{_attn_decoder_forward.1} parent=1 // pred_check_branch
      %38 = sbr.rel (0) target = $region21
    $region20: #{_attn_decoder_forward.1} parent=1 // pred_region
      _
    $region21: #{_attn_decoder_forward.1} parent=1 // pred_fallthru
      _
    // Predicated region
    $region22: #{_attn_decoder_forward.1} parent=1 // pred_check
      _
    $region23: #{_attn_decoder_forward.1} parent=1 // pred_check_branch
      %40 = sbr.rel (0) target = $region25
    $region24: #{_attn_decoder_forward.1} parent=1 // pred_region
      %s42 = ssub.s32 9216, 9216
      %43 = vsyncadd [#allocation6], %s42
      %s44 = sshll.u32 [#allocation5], 4
      %s45 = int_to_ptr.vmem [resolvable:$true] %s44
      %50 = dma.hbm_to_vmem [thread:$0]  %s5, 9216, %s45, [#allocation6], 192, 192, 12
    $region25: #{_attn_decoder_forward.1} parent=1 // pred_fallthru
      _
    // Predicated region
    $region26: #{_attn_decoder_forward.1} parent=1 // pred_check
      _
    $region27: #{_attn_decoder_forward.1} parent=1 // pred_check_branch
      %52 = sbr.rel (0) target = $region29
    $region28: #{_attn_decoder_forward.1} parent=1 // pred_region
      %s54 = ssub.s32 6144, 6144
      %55 = vsyncadd [#allocation6], %s54
      %s56 = sshll.u32 [#allocation7], 4
      %s57 = int_to_ptr.vmem [resolvable:$true] %s56
      %62 = dma.hbm_to_vmem [thread:$0]  %s6, 6144, %s57, [#allocation6], 128, 128, 8
    $region29: #{_attn_decoder_forward.1} parent=1 // pred_fallthru
      _
    // Predicated region
    $region30: #{_attn_decoder_forward.1} parent=1 // pred_check
      _
    $region31: #{_attn_decoder_forward.1} parent=1 // pred_check_branch
      %64 = sbr.rel (0) target = $region33
    $region32: #{_attn_decoder_forward.1} parent=1 // pred_region
      %s66 = ssub.s32 384, 384
      %67 = vsyncadd [#allocation9], %s66
      %s69 = sshll.u32 [#allocation8], 4
      %s70 = int_to_ptr.vmem [resolvable:$true] %s69
      %72 = dma.hbm_to_vmem [thread:$0]  %s7, 384, %s70, [#allocation9]
    $region33: #{_attn_decoder_forward.1} parent=1 // pred_fallthru
      _
    // Predicated region
    $region34: #{_attn_decoder_forward.1} parent=1 // pred_check
      _
    $region35: #{_attn_decoder_forward.1} parent=1 // pred_check_branch
      %74 = sbr.rel (0) target = $region37
    $region36: #{_attn_decoder_forward.1} parent=1 // pred_region
      %75 = dma.done [#allocation3], 1280
    $region37: #{_attn_decoder_forward.1} parent=1 // pred_fallthru
      _
    // Predicated region
    $region38: #{_attn_decoder_forward.1} parent=1 // pred_check
      _
    $region39: #{_attn_decoder_forward.1} parent=1 // pred_check_branch
      %77 = sbr.rel (0) target = $region41
    $region40: #{_attn_decoder_forward.1} parent=1 // pred_region
      %78 = dma.done [#allocation6], 9216
    $region41: #{_attn_decoder_forward.1} parent=1 // pred_fallthru
      _
    // Predicated region
    $region42: #{_attn_decoder_forward.1} parent=1 // pred_check
      _
    $region43: #{_attn_decoder_forward.1} parent=1 // pred_check_branch
      %80 = sbr.rel (0) target = $region45
    $region44: #{_attn_decoder_forward.1} parent=1 // pred_region
      %81 = dma.done [#allocation6], 6144
    $region45: #{_attn_decoder_forward.1} parent=1 // pred_fallthru
      _
    // Predicated region
    $region46: #{_attn_decoder_forward.1} parent=1 // pred_check
      _
    $region47: #{_attn_decoder_forward.1} parent=1 // pred_check_branch
      %83 = sbr.rel (0) target = $region49
    $region48: #{_attn_decoder_forward.1} parent=1 // pred_region
      %84 = dma.done [#allocation9], 384
    $region49: #{_attn_decoder_forward.1} parent=1 // pred_fallthru
      _
    %v86 = vld [vmem:[%s0] sm:$0xff]
    %v87 = vld [vmem:[%s1] sm:$0xff]
    %v88 = vld [vmem:[#allocation2] sm:$0xff]
    %v89 = vld [vmem:[#allocation2 + $0x8] sm:$0xff]
    %v90 = vld [vmem:[#allocation2 + $0x10] sm:$0xff]
    %v91 = vld [vmem:[#allocation2 + $0x18] sm:$0xff]
    %v92 = vld [vmem:[#allocation2 + $0x20] sm:$0xff]
    %v93 = vld [vmem:[#allocation2 + $0x28] sm:$0xff]
    %v94 = vld [vmem:[#allocation2 + $0x30] sm:$0xff]
    %v95 = vld [vmem:[#allocation2 + $0x38] sm:$0xff]
    %v96 = vld [vmem:[#allocation2 + $0x40] sm:$0xff]
    %v97 = vld [vmem:[#allocation2 + $0x48] sm:$0xff]
    %v98 = vld [vmem:[%s3] sm:$0xff]
    %v99 = vld [vmem:[%s3 + $0x8] sm:$0x3]
    %v100 = vld [vmem:[#allocation8] ss:$0 sm:$0xff]
    %v101 = vld [vmem:[#allocation8 + $0x1] ss:$0 sm:$0xff]
    %s102 = scalar_lea.vmem [#allocation8], 2
    %v103 = vld [vmem:[%s102] ss:$8 sm:$0x7]
    %s104 = scalar_lea.vmem [#allocation8], 3
    %v105 = vld [vmem:[%s104] ss:$8 sm:$0x7]
    %s106 = scalar_lea.vmem [#allocation8], 4
    %v107 = vld [vmem:[%s106] ss:$8 sm:$0x3]
    %v108 = vpack.c.bf16 %v87, %v87
    %v109 = vpack.c.bf16 %v89, %v88
    %v110 = vpack.c.bf16 %v91, %v90
    %v111 = vpack.c.bf16 %v93, %v92
    %v112 = vpack.c.bf16 %v95, %v94
    %v113 = vpack.c.bf16 %v97, %v96
    %v114 = vld [vmem:[%s4] sm:$0xf]
    %v115 = vld [vmem:[%s4 + $0x4] sm:$0xf]
    %v116 = vld [vmem:[%s4 + $0x8] sm:$0xf]
    %v117 = vld [vmem:[%s4 + $0xc] sm:$0xf]
    %v118 = vld [vmem:[%s4 + $0x10] sm:$0xf]
    %v119 = vld [vmem:[%s4 + $0x14] sm:$0xf]
    %v120 = vld [vmem:[%s4 + $0x18] sm:$0xf]
    %v121 = vld [vmem:[%s4 + $0x1c] sm:$0xf]
    %v122 = vld [vmem:[%s4 + $0x20] sm:$0xf]
    %v123 = vld [vmem:[%s4 + $0x24] sm:$0xf]
    %v124 = vld [vmem:[%s4 + $0x28] sm:$0xf]
    %v125 = vld [vmem:[%s4 + $0x2c] sm:$0xf]
    %v126 = vld [vmem:[%s4 + $0x30] sm:$0xf]
    %v127 = vld [vmem:[%s4 + $0x34] sm:$0xf]
    %v128 = vld [vmem:[%s4 + $0x38] sm:$0xf]
    %v129 = vld [vmem:[%s4 + $0x3c] sm:$0xf]
    %v130 = vld [vmem:[%s4 + $0x40] sm:$0xf]
    %v131 = vld [vmem:[%s4 + $0x44] sm:$0xf]
    %v132 = vld [vmem:[%s4 + $0x48] sm:$0xf]
    %v133 = vld [vmem:[%s4 + $0x4c] sm:$0xf]
    %v134 = vld [vmem:[%s4 + $0x50] sm:$0xf]
    %v135 = vld [vmem:[%s4 + $0x54] sm:$0xf]
    %v136 = vld [vmem:[%s4 + $0x58] sm:$0xf]
    %v137 = vld [vmem:[%s4 + $0x5c] sm:$0xf]
    %v138 = vld [vmem:[%s4 + $0x60] sm:$0xf]
    %v139 = vld [vmem:[%s4 + $0x64] sm:$0xf]
    %v140 = vld [vmem:[%s4 + $0x68] sm:$0xf]
    %v141 = vld [vmem:[%s4 + $0x6c] sm:$0xf]
    %v142 = vld [vmem:[%s4 + $0x70] sm:$0xf]
    %v143 = vld [vmem:[%s4 + $0x74] sm:$0xf]
    %v144 = vld [vmem:[%s4 + $0x78] sm:$0xf]
    %v145 = vld [vmem:[%s4 + $0x7c] sm:$0xf]
    %v178 = vunpack.c.l.b16 %v114
    %v179 = vunpack.c.l.b16 %v115
    %v180 = vunpack.c.l.b16 %v116
    %v181 = vunpack.c.l.b16 %v117
    %v182 = vunpack.c.l.b16 %v118
    %v183 = vunpack.c.l.b16 %v119
    %v184 = vunpack.c.l.b16 %v120
    %v185 = vunpack.c.l.b16 %v121
    %v186 = vunpack.c.l.b16 %v122
    %v187 = vunpack.c.l.b16 %v123
    %v188 = vunpack.c.l.b16 %v124
    %v189 = vunpack.c.l.b16 %v125
    %v190 = vunpack.c.l.b16 %v126
    %v191 = vunpack.c.l.b16 %v127
    %v192 = vunpack.c.l.b16 %v128
    %v193 = vunpack.c.l.b16 %v129
    %v194 = vunpack.c.l.b16 %v130
    %v195 = vunpack.c.l.b16 %v131
    %v196 = vunpack.c.l.b16 %v132
    %v197 = vunpack.c.l.b16 %v133
    %v198 = vunpack.c.l.b16 %v134
    %v199 = vunpack.c.l.b16 %v135
    %v200 = vunpack.c.l.b16 %v136
    %v201 = vunpack.c.l.b16 %v137
    %v202 = vunpack.c.l.b16 %v138
    %v203 = vunpack.c.l.b16 %v139
    %v204 = vunpack.c.l.b16 %v140
    %v205 = vunpack.c.l.b16 %v141
    %v206 = vunpack.c.l.b16 %v142
    %v207 = vunpack.c.l.b16 %v143
    %v208 = vunpack.c.l.b16 %v144
    %v209 = vunpack.c.l.b16 %v145
    %v210 = vpack.c.b16 %v179, %v178
    %v211 = vpack.c.b16 %v181, %v180
    %v212 = vpack.c.b16 %v183, %v182
    %v213 = vpack.c.b16 %v185, %v184
    %v214 = vpack.c.b16 %v187, %v186
    %v215 = vpack.c.b16 %v189, %v188
    %v216 = vpack.c.b16 %v191, %v190
    %v217 = vpack.c.b16 %v193, %v192
    %v218 = vpack.c.b16 %v195, %v194
    %v219 = vpack.c.b16 %v197, %v196
    %v220 = vpack.c.b16 %v199, %v198
    %v221 = vpack.c.b16 %v201, %v200
    %v222 = vpack.c.b16 %v203, %v202
    %v223 = vpack.c.b16 %v205, %v204
    %v224 = vpack.c.b16 %v207, %v206
    %v225 = vpack.c.b16 %v209, %v208
    %242 = vmatprep.subr.bf16.mxu0 0
    %243 = vmatpush1.bf16.msra.mxu0 %v210
    %244 = vmatprep.subr.bf16.mxu0 0
    %245 = vmatpush1.bf16.msra.mxu0 %v211
    %246 = vmatprep.subr.bf16.mxu0 0
    %247 = vmatpush1.bf16.msra.mxu0 %v212
    %248 = vmatprep.subr.bf16.mxu0 0
    %249 = vmatpush1.bf16.msra.mxu0 %v213
    %250 = vmatprep.subr.bf16.mxu0 0
    %251 = vmatpush1.bf16.msra.mxu0 %v214
    %252 = vmatprep.subr.bf16.mxu0 0
    %253 = vmatpush1.bf16.msra.mxu0 %v215
    %254 = vmatprep.subr.bf16.mxu0 0
    %255 = vmatpush1.bf16.msra.mxu0 %v216
    %256 = vmatprep.subr.bf16.mxu0 0
    %257 = vmatpush1.bf16.msra.mxu0 %v217
    %258 = vmatprep.subr.bf16.mxu0 0
    %259 = vmatpush1.bf16.msra.mxu0 %v218
    %260 = vmatprep.subr.bf16.mxu0 0
    %261 = vmatpush1.bf16.msra.mxu0 %v219
    %262 = vmatprep.subr.bf16.mxu0 0
    %263 = vmatpush1.bf16.msra.mxu0 %v220
    %264 = vmatprep.subr.bf16.mxu0 0
    %265 = vmatpush1.bf16.msra.mxu0 %v221
    %266 = vmatprep.subr.bf16.mxu0 0
    %267 = vmatpush1.bf16.msra.mxu0 %v222
    %268 = vmatprep.subr.bf16.mxu0 0
    %269 = vmatpush1.bf16.msra.mxu0 %v223
    %270 = vmatprep.subr.bf16.mxu0 0
    %271 = vmatpush1.bf16.msra.mxu0 %v224
    %272 = vmatprep.subr.bf16.mxu0 0
    %273 = vmatpush1.bf16.msra.mxu0 %v225
    %274 = vmatprep.mubr.bf16.mxu0 %v109
    %275 = vmatmul.mubr.bf16.gmra.mrb[0].mxu0 %v108
    %v276 = vpop.f32.mrb[0].mxu0
    %v277 = vadd.f32 %v100, %v276
    %v278 = vpop.f32.mrb[0].mxu0
    %v279 = vpop.f32.mrb[0].mxu0
    %v280 = vadd.f32 %v100, %v279
    %v281 = vpop.f32.mrb[0].mxu0
    %282 = vmatprep.mubr.bf16.mxu0 %v110
    %283 = vmatmul.mubr.bf16.gmra.mrb[0].mxu0 %v108
    %v284 = vpop.f32.mrb[0].mxu0
    %v285 = vadd.f32 %v100, %v284
    %v286 = vpop.f32.mrb[0].mxu0
    %v287 = vpop.f32.mrb[0].mxu0
    %v288 = vadd.f32 %v100, %v287
    %v289 = vpop.f32.mrb[0].mxu0
    %290 = vmatprep.mubr.bf16.mxu0 %v111
    %291 = vmatmul.mubr.bf16.gmra.mrb[0].mxu0 %v108
    %v292 = vpop.f32.mrb[0].mxu0
    %v293 = vadd.f32 %v100, %v292
    %v294 = vpop.f32.mrb[0].mxu0
    %v295 = vpop.f32.mrb[0].mxu0
    %v296 = vadd.f32 %v100, %v295
    %v297 = vpop.f32.mrb[0].mxu0
    %298 = vmatprep.mubr.bf16.mxu0 %v112
    %299 = vmatmul.mubr.bf16.gmra.mrb[0].mxu0 %v108
    %v300 = vpop.f32.mrb[0].mxu0
    %v301 = vadd.f32 %v100, %v300
    %v302 = vpop.f32.mrb[0].mxu0
    %v303 = vpop.f32.mrb[0].mxu0
    %v304 = vadd.f32 %v100, %v303
    %v305 = vpop.f32.mrb[0].mxu0
    %306 = vmatprep.mubr.bf16.mxu0 %v113
    %307 = vmatmul.mubr.bf16.gmra.mrb[0].mxu0 %v108
    %v308 = vpop.f32.mrb[0].mxu0
    %v309 = vadd.f32 %v100, %v308
    %v310 = vpop.f32.mrb[0].mxu0
    %v311 = vpop.f32.mrb[0].mxu0
    %v312 = vadd.f32 %v100, %v311
    %v313 = vpop.f32.mrb[0].mxu0
    %314 = vdwg.mxu0
    %v315 = vtanh.pop %v277
    %v316 = vtanh.pop %v280
    %v317 = vtanh.pop %v285
    %v318 = vtanh.pop %v288
    %v319 = vtanh.pop %v293
    %v320 = vtanh.pop %v296
    %v321 = vtanh.pop %v301
    %v322 = vtanh.pop %v304
    %v323 = vtanh.pop %v309
    %v324 = vtanh.pop %v312
    %v325 = vmul.f32 %v315, %v101
    %v326 = vmul.f32 %v316, %v101
    %v327 = vmul.f32 %v317, %v101
    %v328 = vmul.f32 %v318, %v101
    %v329 = vmul.f32 %v319, %v101
    %v330 = vmul.f32 %v320, %v101
    %v331 = vmul.f32 %v321, %v101
    %v332 = vmul.f32 %v322, %v101
    %v333 = vmul.f32 %v323, %v101
    %v334 = vmul.f32 %v324, %v101
    %335 = vadd.xlane.f32.xlu0 %v325
    %v336 = vpop.xlane.xlu0 %335
    %337 = vadd.xlane.f32.xlu0 %v326
    %v338 = vpop.xlane.xlu0 %337
    %339 = vadd.xlane.f32.xlu0 %v327
    %v340 = vpop.xlane.xlu0 %339
    %341 = vadd.xlane.f32.xlu0 %v328
    %v342 = vpop.xlane.xlu0 %341
    %343 = vadd.xlane.f32.xlu0 %v329
    %v344 = vpop.xlane.xlu0 %343
    %345 = vadd.xlane.f32.xlu0 %v330
    %v346 = vpop.xlane.xlu0 %345
    %347 = vadd.xlane.f32.xlu0 %v331
    %v348 = vpop.xlane.xlu0 %347
    %349 = vadd.xlane.f32.xlu0 %v332
    %v350 = vpop.xlane.xlu0 %349
    %351 = vadd.xlane.f32.xlu0 %v333
    %v352 = vpop.xlane.xlu0 %351
    %353 = vadd.xlane.f32.xlu0 %v334
    %v354 = vpop.xlane.xlu0 %353
    %vm355 = vcmp.eq.s32.totalorder %v98, 0
    %vm356 = vcmp.eq.s32.totalorder %v99, 0
    %v367 = vlaneseq
    %v368 = vand.u32 %v367, 127
    %v369 = vlaneseq
    %v370 = vshrl.u32 %v369, 7
    %v371 = vsub.s32 %v368, %v370
    %v372 = vrot.slane %v336, %v371
    %v373 = vlaneseq
    %v374 = vshrl.u32 %v373, 7
    %v375 = vsub.s32 %v368, %v374
    %v376 = vrot.slane %v338, %v375
    %v377 = vlaneseq
    %v378 = vshrl.u32 %v377, 7
    %v379 = vsub.s32 %v368, %v378
    %v380 = vrot.slane %v340, %v379
    %v381 = vlaneseq
    %v382 = vshrl.u32 %v381, 7
    %v383 = vsub.s32 %v368, %v382
    %v384 = vrot.slane %v342, %v383
    %v385 = vlaneseq
    %v386 = vshrl.u32 %v385, 7
    %v387 = vsub.s32 %v368, %v386
    %v388 = vrot.slane %v344, %v387
    %v389 = vlaneseq
    %v390 = vshrl.u32 %v389, 7
    %v391 = vsub.s32 %v368, %v390
    %v392 = vrot.slane %v346, %v391
    %v393 = vlaneseq
    %v394 = vshrl.u32 %v393, 7
    %v395 = vsub.s32 %v368, %v394
    %v396 = vrot.slane %v348, %v395
    %v397 = vlaneseq
    %v398 = vshrl.u32 %v397, 7
    %v399 = vsub.s32 %v368, %v398
    %v400 = vrot.slane %v350, %v399
    %v401 = vlaneseq
    %v402 = vshrl.u32 %v401, 7
    %v403 = vsub.s32 %v368, %v402
    %v404 = vrot.slane %v352, %v403
    %v405 = vlaneseq
    %v406 = vshrl.u32 %v405, 7
    %v407 = vsub.s32 %v368, %v406
    %v408 = vrot.slane %v354, %v407
    %vm409 = vcmask 1041409
    %v410 = vsel %vm409, %v376, %v372
    %vm411 = vcmask 1042434
    %v412 = vsel %vm411, %v380, %v410
    %vm413 = vcmask 1043459
    %v414 = vsel %vm413, %v384, %v412
    %vm415 = vcmask 1044484
    %v416 = vsel %vm415, %v388, %v414
    %vm417 = vcmask 1045509
    %v418 = vsel %vm417, %v392, %v416
    %vm419 = vcmask 1046534
    %v420 = vsel %vm419, %v396, %v418
    %vm421 = vcmask 1047559
    %v422 = vsel %vm421, %v400, %v420
    %v423 = vsel %vm409, %v408, %v404
    %v426 = vsel %vm355, -1e+10, %v422
    %v427 = vsel %vm356, -1e+10, %v423
    %vm428 = vcmask 64512
    %v429 = vsel %vm428, %v426, -inf
    %vm430 = vcmask 58368
    %v431 = vsel %vm430, %v427, -inf
    %v432 = vmax.f32 %v429, %v431
    %v433 = vrot.slane %v432, 4
    %v434 = vmax.f32 %v432, %v433
    %v435 = vrot.slane %v434, 2
    %v436 = vmax.f32 %v434, %v435
    %v437 = vrot.slane %v436, 1
    %v438 = vmax.f32 %v436, %v437
    %v439 = vsub.f32 %v426, %v438
    %v440 = vsub.f32 %v427, %v438
    %v441 = vmul.f32 %v439, 1.442695
    %v442 = vpow.pop %v441
    %v443 = vmul.f32 %v440, 1.442695
    %v444 = vpow.pop %v443
    %v445 = vsel %vm428, %v442, 0.0
    %v446 = vsel %vm430, %v444, 0.0
    %v447 = vadd.f32 %v445, %v446
    %v448 = vrot.slane %v447, 4
    %v449 = vadd.f32 %v447, %v448
    %v450 = vrot.slane %v449, 2
    %v451 = vadd.f32 %v449, %v450
    %v452 = vrot.slane %v451, 1
    %v453 = vadd.f32 %v451, %v452
    %v454 = vrcp.pop %v453
    %v455 = vmul.f32 %v442, %v454
    %v456 = vmul.f32 %v444, %v454
    %v457 = vlaneseq
    %v458 = vshrl.u32 %v457, 7
    %v459 = vsub.s32 0, %v458
    %v460 = vrot.slane %v455, %v459
    %462 = vbcast.lane.b32.xlu0 %v460, 256
    %v463 = vpop.permute.xlu0 %462
    %v464 = vlaneseq
    %v465 = vshrl.u32 %v464, 7
    %v466 = vsub.s32 1, %v465
    %v467 = vrot.slane %v455, %v466
    %469 = vbcast.lane.b32.xlu0 %v467, 256
    %v470 = vpop.permute.xlu0 %469
    %v471 = vlaneseq
    %v472 = vshrl.u32 %v471, 7
    %v473 = vsub.s32 2, %v472
    %v474 = vrot.slane %v455, %v473
    %476 = vbcast.lane.b32.xlu0 %v474, 256
    %v477 = vpop.permute.xlu0 %476
    %v478 = vlaneseq
    %v479 = vshrl.u32 %v478, 7
    %v480 = vsub.s32 3, %v479
    %v481 = vrot.slane %v455, %v480
    %483 = vbcast.lane.b32.xlu0 %v481, 256
    %v484 = vpop.permute.xlu0 %483
    %v485 = vlaneseq
    %v486 = vshrl.u32 %v485, 7
    %v487 = vsub.s32 4, %v486
    %v488 = vrot.slane %v455, %v487
    %490 = vbcast.lane.b32.xlu0 %v488, 256
    %v491 = vpop.permute.xlu0 %490
    %v492 = vlaneseq
    %v493 = vshrl.u32 %v492, 7
    %v494 = vsub.s32 5, %v493
    %v495 = vrot.slane %v455, %v494
    %497 = vbcast.lane.b32.xlu0 %v495, 256
    %v498 = vpop.permute.xlu0 %497
    %v499 = vlaneseq
    %v500 = vshrl.u32 %v499, 7
    %v501 = vsub.s32 6, %v500
    %v502 = vrot.slane %v455, %v501
    %504 = vbcast.lane.b32.xlu0 %v502, 256
    %v505 = vpop.permute.xlu0 %504
    %v506 = vlaneseq
    %v507 = vshrl.u32 %v506, 7
    %v508 = vsub.s32 7, %v507
    %v509 = vrot.slane %v455, %v508
    %511 = vbcast.lane.b32.xlu0 %v509, 256
    %v512 = vpop.permute.xlu0 %511
    %v513 = vlaneseq
    %v514 = vshrl.u32 %v513, 7
    %v515 = vsub.s32 0, %v514
    %v516 = vrot.slane %v456, %v515
    %518 = vbcast.lane.b32.xlu0 %v516, 256
    %v519 = vpop.permute.xlu0 %518
    %v520 = vlaneseq
    %v521 = vshrl.u32 %v520, 7
    %v522 = vsub.s32 1, %v521
    %v523 = vrot.slane %v456, %v522
    %525 = vbcast.lane.b32.xlu0 %v523, 256
    %v526 = vpop.permute.xlu0 %525
    %v527 = vmul.f32 %v463, %v88
    %v528 = vmul.f32 %v470, %v89
    %v529 = vmul.f32 %v477, %v90
    %v530 = vmul.f32 %v484, %v91
    %v531 = vmul.f32 %v491, %v92
    %v532 = vmul.f32 %v498, %v93
    %v533 = vmul.f32 %v505, %v94
    %v534 = vmul.f32 %v512, %v95
    %v535 = vmul.f32 %v519, %v96
    %v536 = vmul.f32 %v526, %v97
    %v537 = vadd.f32 %v527, %v528
    %v538 = vadd.f32 %v537, %v529
    %v539 = vadd.f32 %v538, %v530
    %v540 = vadd.f32 %v539, %v531
    %v541 = vadd.f32 %v540, %v532
    %v542 = vadd.f32 %v541, %v533
    %v543 = vadd.f32 %v542, %v534
    %v544 = vadd.f32 %v543, %v535
    %v545 = vadd.f32 %v544, %v536
    %v546 = vpack.c.bf16 %v86, %v86
    %v547 = vpack.c.bf16 %v545, %v545
    %v548 = vld [vmem:[#allocation5] sm:$0xff]
    %v549 = vld [vmem:[#allocation5 + $0x8] sm:$0xf]
    %v550 = vld [vmem:[#allocation5 + $0xc] sm:$0xff]
    %v551 = vld [vmem:[#allocation5 + $0x14] sm:$0xf]
    %v552 = vld [vmem:[#allocation5 + $0x18] sm:$0xff]
    %v553 = vld [vmem:[#allocation5 + $0x20] sm:$0xf]
    %v554 = vld [vmem:[#allocation5 + $0x24] sm:$0xff]
    %v555 = vld [vmem:[#allocation5 + $0x2c] sm:$0xf]
    %v556 = vld [vmem:[#allocation5 + $0x30] sm:$0xff]
    %v557 = vld [vmem:[#allocation5 + $0x38] sm:$0xf]
    %v558 = vld [vmem:[#allocation5 + $0x3c] sm:$0xff]
    %v559 = vld [vmem:[#allocation5 + $0x44] sm:$0xf]
    %v560 = vld [vmem:[#allocation5 + $0x48] sm:$0xff]
    %v561 = vld [vmem:[#allocation5 + $0x50] sm:$0xf]
    %v562 = vld [vmem:[#allocation5 + $0x54] sm:$0xff]
    %v563 = vld [vmem:[#allocation5 + $0x5c] sm:$0xf]
    %v564 = vld [vmem:[#allocation5 + $0x60] sm:$0xff]
    %v565 = vld [vmem:[#allocation5 + $0x68] sm:$0xf]
    %v566 = vld [vmem:[#allocation5 + $0x6c] sm:$0xff]
    %v567 = vld [vmem:[#allocation5 + $0x74] sm:$0xf]
    %v568 = vld [vmem:[#allocation5 + $0x78] sm:$0xff]
    %v569 = vld [vmem:[#allocation5 + $0x80] sm:$0xf]
    %v570 = vld [vmem:[#allocation5 + $0x84] sm:$0xff]
    %v571 = vld [vmem:[#allocation5 + $0x8c] sm:$0xf]
    %v572 = vld [vmem:[#allocation5 + $0x90] sm:$0xff]
    %v573 = vld [vmem:[#allocation5 + $0x98] sm:$0xf]
    %v574 = vld [vmem:[#allocation5 + $0x9c] sm:$0xff]
    %v575 = vld [vmem:[#allocation5 + $0xa4] sm:$0xf]
    %v576 = vld [vmem:[#allocation5 + $0xa8] sm:$0xff]
    %v577 = vld [vmem:[#allocation5 + $0xb0] sm:$0xf]
    %v578 = vld [vmem:[#allocation5 + $0xb4] sm:$0xff]
    %v579 = vld [vmem:[#allocation5 + $0xbc] sm:$0xf]
    %v580 = vld [vmem:[#allocation5 + $0xc0] sm:$0xff]
    %v581 = vld [vmem:[#allocation5 + $0xc8] sm:$0xf]
    %v582 = vld [vmem:[#allocation5 + $0xcc] sm:$0xff]
    %v583 = vld [vmem:[#allocation5 + $0xd4] sm:$0xf]
    %v584 = vld [vmem:[#allocation5 + $0xd8] sm:$0xff]
    %v585 = vld [vmem:[#allocation5 + $0xe0] sm:$0xf]
    %v586 = vld [vmem:[#allocation5 + $0xe4] sm:$0xff]
    %v587 = vld [vmem:[#allocation5 + $0xec] sm:$0xf]
    %v588 = vld [vmem:[#allocation5 + $0xf0] sm:$0xff]
    %v589 = vld [vmem:[#allocation5 + $0xf8] sm:$0xf]
    %v590 = vld [vmem:[#allocation5 + $0xfc] sm:$0xff]
    %v591 = vld [vmem:[#allocation5 + $0x104] sm:$0xf]
    %v592 = vld [vmem:[#allocation5 + $0x108] sm:$0xff]
    %v593 = vld [vmem:[#allocation5 + $0x110] sm:$0xf]
    %v594 = vld [vmem:[#allocation5 + $0x114] sm:$0xff]
    %v595 = vld [vmem:[#allocation5 + $0x11c] sm:$0xf]
    %v596 = vld [vmem:[#allocation5 + $0x120] sm:$0xff]
    %v597 = vld [vmem:[#allocation5 + $0x128] sm:$0xf]
    %v598 = vld [vmem:[#allocation5 + $0x12c] sm:$0xff]
    %v599 = vld [vmem:[#allocation5 + $0x134] sm:$0xf]
    %v600 = vld [vmem:[#allocation5 + $0x138] sm:$0xff]
    %v601 = vld [vmem:[#allocation5 + $0x140] sm:$0xf]
    %v602 = vld [vmem:[#allocation5 + $0x144] sm:$0xff]
    %v603 = vld [vmem:[#allocation5 + $0x14c] sm:$0xf]
    %v604 = vld [vmem:[#allocation5 + $0x150] sm:$0xff]
    %v605 = vld [vmem:[#allocation5 + $0x158] sm:$0xf]
    %v606 = vld [vmem:[#allocation5 + $0x15c] sm:$0xff]
    %v607 = vld [vmem:[#allocation5 + $0x164] sm:$0xf]
    %v608 = vld [vmem:[#allocation5 + $0x168] sm:$0xff]
    %v609 = vld [vmem:[#allocation5 + $0x170] sm:$0xf]
    %v610 = vld [vmem:[#allocation5 + $0x174] sm:$0xff]
    %v611 = vld [vmem:[#allocation5 + $0x17c] sm:$0xf]
    %v613 = vlaneseq
    %v614 = vshrl.u32 %v613, 7
    %v615 = vsub.s32 0, %v614
    %v616 = vrot.slane %v103, %v615
    %v617 = vlaneseq
    %v618 = vshrl.u32 %v617, 7
    %v619 = vsub.s32 1, %v618
    %v620 = vrot.slane %v103, %v619
    %v621 = vlaneseq
    %v622 = vshrl.u32 %v621, 7
    %v623 = vsub.s32 2, %v622
    %v624 = vrot.slane %v103, %v623
    %v692 = vunpack.c.l.b16 %v548
    %v693 = vunpack.c.h.b16 %v548
    %v694 = vunpack.c.l.b16 %v549
    %v695 = vunpack.c.l.b16 %v550
    %v696 = vunpack.c.h.b16 %v550
    %v697 = vunpack.c.l.b16 %v551
    %v698 = vunpack.c.l.b16 %v552
    %v699 = vunpack.c.h.b16 %v552
    %v700 = vunpack.c.l.b16 %v553
    %v701 = vunpack.c.l.b16 %v554
    %v702 = vunpack.c.h.b16 %v554
    %v703 = vunpack.c.l.b16 %v555
    %v704 = vunpack.c.l.b16 %v556
    %v705 = vunpack.c.h.b16 %v556
    %v706 = vunpack.c.l.b16 %v557
    %v707 = vunpack.c.l.b16 %v558
    %v708 = vunpack.c.h.b16 %v558
    %v709 = vunpack.c.l.b16 %v559
    %v710 = vunpack.c.l.b16 %v560
    %v711 = vunpack.c.h.b16 %v560
    %v712 = vunpack.c.l.b16 %v561
    %v713 = vunpack.c.l.b16 %v562
    %v714 = vunpack.c.h.b16 %v562
    %v715 = vunpack.c.l.b16 %v563
    %v716 = vunpack.c.l.b16 %v564
    %v717 = vunpack.c.h.b16 %v564
    %v718 = vunpack.c.l.b16 %v565
    %v719 = vunpack.c.l.b16 %v566
    %v720 = vunpack.c.h.b16 %v566
    %v721 = vunpack.c.l.b16 %v567
    %v722 = vunpack.c.l.b16 %v568
    %v723 = vunpack.c.h.b16 %v568
    %v724 = vunpack.c.l.b16 %v569
    %v725 = vunpack.c.l.b16 %v570
    %v726 = vunpack.c.h.b16 %v570
    %v727 = vunpack.c.l.b16 %v571
    %v728 = vunpack.c.l.b16 %v572
    %v729 = vunpack.c.h.b16 %v572
    %v730 = vunpack.c.l.b16 %v573
    %v731 = vunpack.c.l.b16 %v574
    %v732 = vunpack.c.h.b16 %v574
    %v733 = vunpack.c.l.b16 %v575
    %v734 = vunpack.c.l.b16 %v576
    %v735 = vunpack.c.h.b16 %v576
    %v736 = vunpack.c.l.b16 %v577
    %v737 = vunpack.c.l.b16 %v578
    %v738 = vunpack.c.h.b16 %v578
    %v739 = vunpack.c.l.b16 %v579
    %v740 = vunpack.c.l.b16 %v580
    %v741 = vunpack.c.h.b16 %v580
    %v742 = vunpack.c.l.b16 %v581
    %v743 = vunpack.c.l.b16 %v582
    %v744 = vunpack.c.h.b16 %v582
    %v745 = vunpack.c.l.b16 %v583
    %v746 = vunpack.c.l.b16 %v584
    %v747 = vunpack.c.h.b16 %v584
    %v748 = vunpack.c.l.b16 %v585
    %v749 = vunpack.c.l.b16 %v586
    %v750 = vunpack.c.h.b16 %v586
    %v751 = vunpack.c.l.b16 %v587
    %v752 = vunpack.c.l.b16 %v588
    %v753 = vunpack.c.h.b16 %v588
    %v754 = vunpack.c.l.b16 %v589
    %v755 = vunpack.c.l.b16 %v590
    %v756 = vunpack.c.h.b16 %v590
    %v757 = vunpack.c.l.b16 %v591
    %v758 = vunpack.c.l.b16 %v592
    %v759 = vunpack.c.h.b16 %v592
    %v760 = vunpack.c.l.b16 %v593
    %v761 = vunpack.c.l.b16 %v594
    %v762 = vunpack.c.h.b16 %v594
    %v763 = vunpack.c.l.b16 %v595
    %v764 = vunpack.c.l.b16 %v596
    %v765 = vunpack.c.h.b16 %v596
    %v766 = vunpack.c.l.b16 %v597
    %v767 = vunpack.c.l.b16 %v598
    %v768 = vunpack.c.h.b16 %v598
    %v769 = vunpack.c.l.b16 %v599
    %v770 = vunpack.c.l.b16 %v600
    %v771 = vunpack.c.h.b16 %v600
    %v772 = vunpack.c.l.b16 %v601
    %v773 = vunpack.c.l.b16 %v602
    %v774 = vunpack.c.h.b16 %v602
    %v775 = vunpack.c.l.b16 %v603
    %v776 = vunpack.c.l.b16 %v604
    %v777 = vunpack.c.h.b16 %v604
    %v778 = vunpack.c.l.b16 %v605
    %v779 = vunpack.c.l.b16 %v606
    %v780 = vunpack.c.h.b16 %v606
    %v781 = vunpack.c.l.b16 %v607
    %v782 = vunpack.c.l.b16 %v608
    %v783 = vunpack.c.h.b16 %v608
    %v784 = vunpack.c.l.b16 %v609
    %v785 = vunpack.c.l.b16 %v610
    %v786 = vunpack.c.h.b16 %v610
    %v787 = vunpack.c.l.b16 %v611
    %v788 = vpack.c.b16 %v695, %v692
    %v789 = vpack.c.b16 %v696, %v693
    %v790 = vpack.c.b16 %v697, %v694
    %v791 = vpack.c.b16 %v701, %v698
    %v792 = vpack.c.b16 %v702, %v699
    %v793 = vpack.c.b16 %v703, %v700
    %v794 = vpack.c.b16 %v707, %v704
    %v795 = vpack.c.b16 %v708, %v705
    %v796 = vpack.c.b16 %v709, %v706
    %v797 = vpack.c.b16 %v713, %v710
    %v798 = vpack.c.b16 %v714, %v711
    %v799 = vpack.c.b16 %v715, %v712
    %v800 = vpack.c.b16 %v719, %v716
    %v801 = vpack.c.b16 %v720, %v717
    %v802 = vpack.c.b16 %v721, %v718
    %v803 = vpack.c.b16 %v725, %v722
    %v804 = vpack.c.b16 %v726, %v723
    %v805 = vpack.c.b16 %v727, %v724
    %v806 = vpack.c.b16 %v731, %v728
    %v807 = vpack.c.b16 %v732, %v729
    %v808 = vpack.c.b16 %v733, %v730
    %v809 = vpack.c.b16 %v737, %v734
    %v810 = vpack.c.b16 %v738, %v735
    %v811 = vpack.c.b16 %v739, %v736
    %v812 = vpack.c.b16 %v743, %v740
    %v813 = vpack.c.b16 %v744, %v741
    %v814 = vpack.c.b16 %v745, %v742
    %v815 = vpack.c.b16 %v749, %v746
    %v816 = vpack.c.b16 %v750, %v747
    %v817 = vpack.c.b16 %v751, %v748
    %v818 = vpack.c.b16 %v755, %v752
    %v819 = vpack.c.b16 %v756, %v753
    %v820 = vpack.c.b16 %v757, %v754
    %v821 = vpack.c.b16 %v761, %v758
    %v822 = vpack.c.b16 %v762, %v759
    %v823 = vpack.c.b16 %v763, %v760
    %v824 = vpack.c.b16 %v767, %v764
    %v825 = vpack.c.b16 %v768, %v765
    %v826 = vpack.c.b16 %v769, %v766
    %v827 = vpack.c.b16 %v773, %v770
    %v828 = vpack.c.b16 %v774, %v771
    %v829 = vpack.c.b16 %v775, %v772
    %v830 = vpack.c.b16 %v779, %v776
    %v831 = vpack.c.b16 %v780, %v777
    %v832 = vpack.c.b16 %v781, %v778
    %v833 = vpack.c.b16 %v785, %v782
    %v834 = vpack.c.b16 %v786, %v783
    %v835 = vpack.c.b16 %v787, %v784
    %884 = vmatprep.subr.bf16.mxu0 %v789
    %885 = vmatpush1.bf16.msra.mxu0 %v788
    %886 = vmatprep.subr.bf16.mxu0 %v792
    %887 = vmatpush1.bf16.msra.mxu0 %v791
    %888 = vmatprep.subr.bf16.mxu0 %v795
    %889 = vmatpush1.bf16.msra.mxu0 %v794
    %890 = vmatprep.subr.bf16.mxu0 %v798
    %891 = vmatpush1.bf16.msra.mxu0 %v797
    %892 = vmatprep.subr.bf16.mxu0 %v801
    %893 = vmatpush1.bf16.msra.mxu0 %v800
    %894 = vmatprep.subr.bf16.mxu0 %v804
    %895 = vmatpush1.bf16.msra.mxu0 %v803
    %896 = vmatprep.subr.bf16.mxu0 %v807
    %897 = vmatpush1.bf16.msra.mxu0 %v806
    %898 = vmatprep.subr.bf16.mxu0 %v810
    %899 = vmatpush1.bf16.msra.mxu0 %v809
    %900 = vmatprep.subr.bf16.mxu0 %v813
    %901 = vmatpush1.bf16.msra.mxu0 %v812
    %902 = vmatprep.subr.bf16.mxu0 %v816
    %903 = vmatpush1.bf16.msra.mxu0 %v815
    %904 = vmatprep.subr.bf16.mxu0 %v819
    %905 = vmatpush1.bf16.msra.mxu0 %v818
    %906 = vmatprep.subr.bf16.mxu0 %v822
    %907 = vmatpush1.bf16.msra.mxu0 %v821
    %908 = vmatprep.subr.bf16.mxu0 %v825
    %909 = vmatpush1.bf16.msra.mxu0 %v824
    %910 = vmatprep.subr.bf16.mxu0 %v828
    %911 = vmatpush1.bf16.msra.mxu0 %v827
    %912 = vmatprep.subr.bf16.mxu0 %v831
    %913 = vmatpush1.bf16.msra.mxu0 %v830
    %914 = vmatprep.subr.bf16.mxu0 %v834
    %915 = vmatpush1.bf16.msra.mxu0 %v833
    %916 = vmatprep.mubr.bf16.mxu0 %v547
    %917 = vmatmul.mubr.bf16.gmra.mrb[0].mxu0 %v546
    %v918 = vpop.f32.mrb[0].mxu0
    %v919 = vadd.f32 %v616, %v918
    %v920 = vpop.f32.mrb[0].mxu0
    %v921 = vadd.f32 %v620, %v920
    %v922 = vpop.f32.mrb[0].mxu0
    %v923 = vpop.f32.mrb[0].mxu0
    %924 = vdwg.mxu0
    %925 = vmatprep.subr.bf16.mxu0 0
    %926 = vmatpush1.bf16.msra.mxu0 %v790
    %927 = vmatprep.subr.bf16.mxu0 0
    %928 = vmatpush1.bf16.msra.mxu0 %v793
    %929 = vmatprep.subr.bf16.mxu0 0
    %930 = vmatpush1.bf16.msra.mxu0 %v796
    %931 = vmatprep.subr.bf16.mxu0 0
    %932 = vmatpush1.bf16.msra.mxu0 %v799
    %933 = vmatprep.subr.bf16.mxu0 0
    %934 = vmatpush1.bf16.msra.mxu0 %v802
    %935 = vmatprep.subr.bf16.mxu0 0
    %936 = vmatpush1.bf16.msra.mxu0 %v805
    %937 = vmatprep.subr.bf16.mxu0 0
    %938 = vmatpush1.bf16.msra.mxu0 %v808
    %939 = vmatprep.subr.bf16.mxu0 0
    %940 = vmatpush1.bf16.msra.mxu0 %v811
    %941 = vmatprep.subr.bf16.mxu0 0
    %942 = vmatpush1.bf16.msra.mxu0 %v814
    %943 = vmatprep.subr.bf16.mxu0 0
    %944 = vmatpush1.bf16.msra.mxu0 %v817
    %945 = vmatprep.subr.bf16.mxu0 0
    %946 = vmatpush1.bf16.msra.mxu0 %v820
    %947 = vmatprep.subr.bf16.mxu0 0
    %948 = vmatpush1.bf16.msra.mxu0 %v823
    %949 = vmatprep.subr.bf16.mxu0 0
    %950 = vmatpush1.bf16.msra.mxu0 %v826
    %951 = vmatprep.subr.bf16.mxu0 0
    %952 = vmatpush1.bf16.msra.mxu0 %v829
    %953 = vmatprep.subr.bf16.mxu0 0
    %954 = vmatpush1.bf16.msra.mxu0 %v832
    %955 = vmatprep.subr.bf16.mxu0 0
    %956 = vmatpush1.bf16.msra.mxu0 %v835
    %957 = vmatprep.mubr.bf16.mxu0 %v547
    %958 = vmatmul.mubr.bf16.gmra.mrb[0].mxu0 %v546
    %v959 = vpop.f32.mrb[0].mxu0
    %v960 = vadd.f32 %v624, %v959
    %v961 = vpop.f32.mrb[0].mxu0
    %v962 = vpop.f32.mrb[0].mxu0
    %v963 = vpop.f32.mrb[0].mxu0
    %964 = vdwg.mxu0
    %v965 = vld [vmem:[#allocation5 + $0x180] sm:$0xff]
    %v966 = vld [vmem:[#allocation5 + $0x188] sm:$0xf]
    %v967 = vld [vmem:[#allocation5 + $0x18c] sm:$0xff]
    %v968 = vld [vmem:[#allocation5 + $0x194] sm:$0xf]
    %v969 = vld [vmem:[#allocation5 + $0x198] sm:$0xff]
    %v970 = vld [vmem:[#allocation5 + $0x1a0] sm:$0xf]
    %v971 = vld [vmem:[#allocation5 + $0x1a4] sm:$0xff]
    %v972 = vld [vmem:[#allocation5 + $0x1ac] sm:$0xf]
    %v973 = vld [vmem:[#allocation5 + $0x1b0] sm:$0xff]
    %v974 = vld [vmem:[#allocation5 + $0x1b8] sm:$0xf]
    %v975 = vld [vmem:[#allocation5 + $0x1bc] sm:$0xff]
    %v976 = vld [vmem:[#allocation5 + $0x1c4] sm:$0xf]
    %v977 = vld [vmem:[#allocation5 + $0x1c8] sm:$0xff]
    %v978 = vld [vmem:[#allocation5 + $0x1d0] sm:$0xf]
    %v979 = vld [vmem:[#allocation5 + $0x1d4] sm:$0xff]
    %v980 = vld [vmem:[#allocation5 + $0x1dc] sm:$0xf]
    %v981 = vld [vmem:[#allocation5 + $0x1e0] sm:$0xff]
    %v982 = vld [vmem:[#allocation5 + $0x1e8] sm:$0xf]
    %v983 = vld [vmem:[#allocation5 + $0x1ec] sm:$0xff]
    %v984 = vld [vmem:[#allocation5 + $0x1f4] sm:$0xf]
    %v985 = vld [vmem:[#allocation5 + $0x1f8] sm:$0xff]
    %v986 = vld [vmem:[#allocation5 + $0x200] sm:$0xf]
    %v987 = vld [vmem:[#allocation5 + $0x204] sm:$0xff]
    %v988 = vld [vmem:[#allocation5 + $0x20c] sm:$0xf]
    %v989 = vld [vmem:[#allocation5 + $0x210] sm:$0xff]
    %v990 = vld [vmem:[#allocation5 + $0x218] sm:$0xf]
    %v991 = vld [vmem:[#allocation5 + $0x21c] sm:$0xff]
    %v992 = vld [vmem:[#allocation5 + $0x224] sm:$0xf]
    %v993 = vld [vmem:[#allocation5 + $0x228] sm:$0xff]
    %v994 = vld [vmem:[#allocation5 + $0x230] sm:$0xf]
    %v995 = vld [vmem:[#allocation5 + $0x234] sm:$0xff]
    %v996 = vld [vmem:[#allocation5 + $0x23c] sm:$0xf]
    %v998 = vlaneseq
    %v999 = vshrl.u32 %v998, 7
    %v1000 = vsub.s32 0, %v999
    %v1001 = vrot.slane %v105, %v1000
    %v1002 = vlaneseq
    %v1003 = vshrl.u32 %v1002, 7
    %v1004 = vsub.s32 1, %v1003
    %v1005 = vrot.slane %v105, %v1004
    %v1006 = vlaneseq
    %v1007 = vshrl.u32 %v1006, 7
    %v1008 = vsub.s32 2, %v1007
    %v1009 = vrot.slane %v105, %v1008
    %v1045 = vunpack.c.l.b16 %v965
    %v1046 = vunpack.c.h.b16 %v965
    %v1047 = vunpack.c.l.b16 %v966
    %v1048 = vunpack.c.l.b16 %v967
    %v1049 = vunpack.c.h.b16 %v967
    %v1050 = vunpack.c.l.b16 %v968
    %v1051 = vunpack.c.l.b16 %v969
    %v1052 = vunpack.c.h.b16 %v969
    %v1053 = vunpack.c.l.b16 %v970
    %v1054 = vunpack.c.l.b16 %v971
    %v1055 = vunpack.c.h.b16 %v971
    %v1056 = vunpack.c.l.b16 %v972
    %v1057 = vunpack.c.l.b16 %v973
    %v1058 = vunpack.c.h.b16 %v973
    %v1059 = vunpack.c.l.b16 %v974
    %v1060 = vunpack.c.l.b16 %v975
    %v1061 = vunpack.c.h.b16 %v975
    %v1062 = vunpack.c.l.b16 %v976
    %v1063 = vunpack.c.l.b16 %v977
    %v1064 = vunpack.c.h.b16 %v977
    %v1065 = vunpack.c.l.b16 %v978
    %v1066 = vunpack.c.l.b16 %v979
    %v1067 = vunpack.c.h.b16 %v979
    %v1068 = vunpack.c.l.b16 %v980
    %v1069 = vunpack.c.l.b16 %v981
    %v1070 = vunpack.c.h.b16 %v981
    %v1071 = vunpack.c.l.b16 %v982
    %v1072 = vunpack.c.l.b16 %v983
    %v1073 = vunpack.c.h.b16 %v983
    %v1074 = vunpack.c.l.b16 %v984
    %v1075 = vunpack.c.l.b16 %v985
    %v1076 = vunpack.c.h.b16 %v985
    %v1077 = vunpack.c.l.b16 %v986
    %v1078 = vunpack.c.l.b16 %v987
    %v1079 = vunpack.c.h.b16 %v987
    %v1080 = vunpack.c.l.b16 %v988
    %v1081 = vunpack.c.l.b16 %v989
    %v1082 = vunpack.c.h.b16 %v989
    %v1083 = vunpack.c.l.b16 %v990
    %v1084 = vunpack.c.l.b16 %v991
    %v1085 = vunpack.c.h.b16 %v991
    %v1086 = vunpack.c.l.b16 %v992
    %v1087 = vunpack.c.l.b16 %v993
    %v1088 = vunpack.c.h.b16 %v993
    %v1089 = vunpack.c.l.b16 %v994
    %v1090 = vunpack.c.l.b16 %v995
    %v1091 = vunpack.c.h.b16 %v995
    %v1092 = vunpack.c.l.b16 %v996
    %v1093 = vpack.c.b16 %v1048, %v1045
    %v1094 = vpack.c.b16 %v1049, %v1046
    %v1095 = vpack.c.b16 %v1050, %v1047
    %v1096 = vpack.c.b16 %v1054, %v1051
    %v1097 = vpack.c.b16 %v1055, %v1052
    %v1098 = vpack.c.b16 %v1056, %v1053
    %v1099 = vpack.c.b16 %v1060, %v1057
    %v1100 = vpack.c.b16 %v1061, %v1058
    %v1101 = vpack.c.b16 %v1062, %v1059
    %v1102 = vpack.c.b16 %v1066, %v1063
    %v1103 = vpack.c.b16 %v1067, %v1064
    %v1104 = vpack.c.b16 %v1068, %v1065
    %v1105 = vpack.c.b16 %v1072, %v1069
    %v1106 = vpack.c.b16 %v1073, %v1070
    %v1107 = vpack.c.b16 %v1074, %v1071
    %v1108 = vpack.c.b16 %v1078, %v1075
    %v1109 = vpack.c.b16 %v1079, %v1076
    %v1110 = vpack.c.b16 %v1080, %v1077
    %v1111 = vpack.c.b16 %v1084, %v1081
    %v1112 = vpack.c.b16 %v1085, %v1082
    %v1113 = vpack.c.b16 %v1086, %v1083
    %v1114 = vpack.c.b16 %v1090, %v1087
    %v1115 = vpack.c.b16 %v1091, %v1088
    %v1116 = vpack.c.b16 %v1092, %v1089
    %1141 = vmatprep.subr.bf16.mxu0 %v1094
    %1142 = vmatpush1.bf16.msra.mxu0 %v1093
    %1143 = vmatprep.subr.bf16.mxu0 %v1097
    %1144 = vmatpush1.bf16.msra.mxu0 %v1096
    %1145 = vmatprep.subr.bf16.mxu0 %v1100
    %1146 = vmatpush1.bf16.msra.mxu0 %v1099
    %1147 = vmatprep.subr.bf16.mxu0 %v1103
    %1148 = vmatpush1.bf16.msra.mxu0 %v1102
    %1149 = vmatprep.subr.bf16.mxu0 %v1106
    %1150 = vmatpush1.bf16.msra.mxu0 %v1105
    %1151 = vmatprep.subr.bf16.mxu0 %v1109
    %1152 = vmatpush1.bf16.msra.mxu0 %v1108
    %1153 = vmatprep.subr.bf16.mxu0 %v1112
    %1154 = vmatpush1.bf16.msra.mxu0 %v1111
    %1155 = vmatprep.subr.bf16.mxu0 %v1115
    %1156 = vmatpush1.bf16.msra.mxu0 %v1114
    %1157 = vmatprep.subr.bf16.mxu0 0
    %1158 = vmatpush1.bf16.msra.mxu0 0
    %1159 = vmatprep.subr.bf16.mxu0 0
    %1160 = vmatpush1.bf16.msra.mxu0 0
    %1161 = vmatprep.subr.bf16.mxu0 0
    %1162 = vmatpush1.bf16.msra.mxu0 0
    %1163 = vmatprep.subr.bf16.mxu0 0
    %1164 = vmatpush1.bf16.msra.mxu0 0
    %1165 = vmatprep.subr.bf16.mxu0 0
    %1166 = vmatpush1.bf16.msra.mxu0 0
    %1167 = vmatprep.subr.bf16.mxu0 0
    %1168 = vmatpush1.bf16.msra.mxu0 0
    %1169 = vmatprep.subr.bf16.mxu0 0
    %1170 = vmatpush1.bf16.msra.mxu0 0
    %1171 = vmatprep.subr.bf16.mxu0 0
    %1172 = vmatpush1.bf16.msra.mxu0 0
    %1173 = vmatprep.mubr.bf16.mxu0 0
    %1174 = vmatmul.mubr.bf16.gmra.mrb[0].mxu0 %v108
    %v1175 = vpop.f32.mrb[0].mxu0
    %v1176 = vadd.f32 %v1001, %v1175
    %v1177 = vpop.f32.mrb[0].mxu0
    %v1178 = vadd.f32 %v1005, %v1177
    %v1179 = vpop.f32.mrb[0].mxu0
    %v1180 = vpop.f32.mrb[0].mxu0
    %1181 = vdwg.mxu0
    %1182 = vmatprep.subr.bf16.mxu0 0
    %1183 = vmatpush1.bf16.msra.mxu0 %v1095
    %1184 = vmatprep.subr.bf16.mxu0 0
    %1185 = vmatpush1.bf16.msra.mxu0 %v1098
    %1186 = vmatprep.subr.bf16.mxu0 0
    %1187 = vmatpush1.bf16.msra.mxu0 %v1101
    %1188 = vmatprep.subr.bf16.mxu0 0
    %1189 = vmatpush1.bf16.msra.mxu0 %v1104
    %1190 = vmatprep.subr.bf16.mxu0 0
    %1191 = vmatpush1.bf16.msra.mxu0 %v1107
    %1192 = vmatprep.subr.bf16.mxu0 0
    %1193 = vmatpush1.bf16.msra.mxu0 %v1110
    %1194 = vmatprep.subr.bf16.mxu0 0
    %1195 = vmatpush1.bf16.msra.mxu0 %v1113
    %1196 = vmatprep.subr.bf16.mxu0 0
    %1197 = vmatpush1.bf16.msra.mxu0 %v1116
    %1198 = vmatprep.subr.bf16.mxu0 0
    %1199 = vmatpush1.bf16.msra.mxu0 0
    %1200 = vmatprep.subr.bf16.mxu0 0
    %1201 = vmatpush1.bf16.msra.mxu0 0
    %1202 = vmatprep.subr.bf16.mxu0 0
    %1203 = vmatpush1.bf16.msra.mxu0 0
    %1204 = vmatprep.subr.bf16.mxu0 0
    %1205 = vmatpush1.bf16.msra.mxu0 0
    %1206 = vmatprep.subr.bf16.mxu0 0
    %1207 = vmatpush1.bf16.msra.mxu0 0
    %1208 = vmatprep.subr.bf16.mxu0 0
    %1209 = vmatpush1.bf16.msra.mxu0 0
    %1210 = vmatprep.subr.bf16.mxu0 0
    %1211 = vmatpush1.bf16.msra.mxu0 0
    %1212 = vmatprep.subr.bf16.mxu0 0
    %1213 = vmatpush1.bf16.msra.mxu0 0
    %1214 = vmatprep.mubr.bf16.mxu0 0
    %1215 = vmatmul.mubr.bf16.gmra.mrb[0].mxu0 %v108
    %v1216 = vpop.f32.mrb[0].mxu0
    %v1217 = vadd.f32 %v1009, %v1216
    %v1218 = vpop.f32.mrb[0].mxu0
    %v1219 = vpop.f32.mrb[0].mxu0
    %v1220 = vpop.f32.mrb[0].mxu0
    %1221 = vdwg.mxu0
    %v1222 = vadd.f32 %v919, %v1176
    %v1223 = vxor.u32 %v1222, 2147483648
    %v1224 = vmul.f32 %v1223, 1.442695
    %v1225 = vpow.pop %v1224
    %v1226 = vadd.f32 %v1225, 1.0
    %v1227 = vrcp.pop %v1226
    %v1228 = vmul.f32 1.0, %v1227
    %v1229 = vadd.f32 %v921, %v1178
    %v1230 = vxor.u32 %v1229, 2147483648
    %v1231 = vmul.f32 %v1230, 1.442695
    %v1232 = vpow.pop %v1231
    %v1233 = vadd.f32 %v1232, 1.0
    %v1234 = vrcp.pop %v1233
    %v1235 = vmul.f32 1.0, %v1234
    %v1236 = vmul.f32 %v1228, %v1217
    %v1237 = vadd.f32 %v960, %v1236
    %v1238 = vtanh.pop %v1237
    %v1239 = vsub.f32 1.0, %v1235
    %v1240 = vmul.f32 %v1239, %v1238
    %v1241 = vmul.f32 %v1235, %v87
    %v1242 = vadd.f32 %v1240, %v1241
    %v1243 = vpack.c.bf16 %v1242, %v1242
    %v1244 = vld [vmem:[#allocation7] sm:$0xff]
    %v1245 = vld [vmem:[#allocation7 + $0x8] sm:$0xff]
    %v1246 = vld [vmem:[#allocation7 + $0x10] sm:$0xff]
    %v1247 = vld [vmem:[#allocation7 + $0x18] sm:$0xff]
    %v1248 = vld [vmem:[#allocation7 + $0x20] sm:$0xff]
    %v1249 = vld [vmem:[#allocation7 + $0x28] sm:$0xff]
    %v1250 = vld [vmem:[#allocation7 + $0x30] sm:$0xff]
    %v1251 = vld [vmem:[#allocation7 + $0x38] sm:$0xff]
    %v1252 = vld [vmem:[#allocation7 + $0x40] sm:$0xff]
    %v1253 = vld [vmem:[#allocation7 + $0x48] sm:$0xff]
    %v1254 = vld [vmem:[#allocation7 + $0x50] sm:$0xff]
    %v1255 = vld [vmem:[#allocation7 + $0x58] sm:$0xff]
    %v1256 = vld [vmem:[#allocation7 + $0x60] sm:$0xff]
    %v1257 = vld [vmem:[#allocation7 + $0x68] sm:$0xff]
    %v1258 = vld [vmem:[#allocation7 + $0x70] sm:$0xff]
    %v1259 = vld [vmem:[#allocation7 + $0x78] sm:$0xff]
    %v1260 = vld [vmem:[#allocation7 + $0x80] sm:$0xff]
    %v1261 = vld [vmem:[#allocation7 + $0x88] sm:$0xff]
    %v1262 = vld [vmem:[#allocation7 + $0x90] sm:$0xff]
    %v1263 = vld [vmem:[#allocation7 + $0x98] sm:$0xff]
    %v1264 = vld [vmem:[#allocation7 + $0xa0] sm:$0xff]
    %v1265 = vld [vmem:[#allocation7 + $0xa8] sm:$0xff]
    %v1266 = vld [vmem:[#allocation7 + $0xb0] sm:$0xff]
    %v1267 = vld [vmem:[#allocation7 + $0xb8] sm:$0xff]
    %v1268 = vld [vmem:[#allocation7 + $0xc0] sm:$0xff]
    %v1269 = vld [vmem:[#allocation7 + $0xc8] sm:$0xff]
    %v1270 = vld [vmem:[#allocation7 + $0xd0] sm:$0xff]
    %v1271 = vld [vmem:[#allocation7 + $0xd8] sm:$0xff]
    %v1272 = vld [vmem:[#allocation7 + $0xe0] sm:$0xff]
    %v1273 = vld [vmem:[#allocation7 + $0xe8] sm:$0xff]
    %v1274 = vld [vmem:[#allocation7 + $0xf0] sm:$0xff]
    %v1275 = vld [vmem:[#allocation7 + $0xf8] sm:$0xff]
    %v1276 = vld [vmem:[#allocation7 + $0x100] sm:$0xff]
    %v1277 = vld [vmem:[#allocation7 + $0x108] sm:$0xff]
    %v1278 = vld [vmem:[#allocation7 + $0x110] sm:$0xff]
    %v1279 = vld [vmem:[#allocation7 + $0x118] sm:$0xff]
    %v1280 = vld [vmem:[#allocation7 + $0x120] sm:$0xff]
    %v1281 = vld [vmem:[#allocation7 + $0x128] sm:$0xff]
    %v1282 = vld [vmem:[#allocation7 + $0x130] sm:$0xff]
    %v1283 = vld [vmem:[#allocation7 + $0x138] sm:$0xff]
    %v1284 = vld [vmem:[#allocation7 + $0x140] sm:$0xff]
    %v1285 = vld [vmem:[#allocation7 + $0x148] sm:$0xff]
    %v1286 = vld [vmem:[#allocation7 + $0x150] sm:$0xff]
    %v1287 = vld [vmem:[#allocation7 + $0x158] sm:$0xff]
    %v1288 = vld [vmem:[#allocation7 + $0x160] sm:$0xff]
    %v1289 = vld [vmem:[#allocation7 + $0x168] sm:$0xff]
    %v1290 = vld [vmem:[#allocation7 + $0x170] sm:$0xff]
    %v1291 = vld [vmem:[#allocation7 + $0x178] sm:$0xff]
    %v1293 = vlaneseq
    %v1294 = vshrl.u32 %v1293, 7
    %v1295 = vsub.s32 0, %v1294
    %v1296 = vrot.slane %v107, %v1295
    %v1297 = vlaneseq
    %v1298 = vshrl.u32 %v1297, 7
    %v1299 = vsub.s32 1, %v1298
    %v1300 = vrot.slane %v107, %v1299
    %v1351 = vunpack.c.l.b16 %v1244
    %v1352 = vunpack.c.h.b16 %v1244
    %v1353 = vunpack.c.l.b16 %v1245
    %v1354 = vunpack.c.h.b16 %v1245
    %v1355 = vunpack.c.l.b16 %v1246
    %v1356 = vunpack.c.h.b16 %v1246
    %v1357 = vunpack.c.l.b16 %v1247
    %v1358 = vunpack.c.h.b16 %v1247
    %v1359 = vunpack.c.l.b16 %v1248
    %v1360 = vunpack.c.h.b16 %v1248
    %v1361 = vunpack.c.l.b16 %v1249
    %v1362 = vunpack.c.h.b16 %v1249
    %v1363 = vunpack.c.l.b16 %v1250
    %v1364 = vunpack.c.h.b16 %v1250
    %v1365 = vunpack.c.l.b16 %v1251
    %v1366 = vunpack.c.h.b16 %v1251
    %v1367 = vunpack.c.l.b16 %v1252
    %v1368 = vunpack.c.h.b16 %v1252
    %v1369 = vunpack.c.l.b16 %v1253
    %v1370 = vunpack.c.h.b16 %v1253
    %v1371 = vunpack.c.l.b16 %v1254
    %v1372 = vunpack.c.h.b16 %v1254
    %v1373 = vunpack.c.l.b16 %v1255
    %v1374 = vunpack.c.h.b16 %v1255
    %v1375 = vunpack.c.l.b16 %v1256
    %v1376 = vunpack.c.h.b16 %v1256
    %v1377 = vunpack.c.l.b16 %v1257
    %v1378 = vunpack.c.h.b16 %v1257
    %v1379 = vunpack.c.l.b16 %v1258
    %v1380 = vunpack.c.h.b16 %v1258
    %v1381 = vunpack.c.l.b16 %v1259
    %v1382 = vunpack.c.h.b16 %v1259
    %v1383 = vunpack.c.l.b16 %v1260
    %v1384 = vunpack.c.h.b16 %v1260
    %v1385 = vunpack.c.l.b16 %v1261
    %v1386 = vunpack.c.h.b16 %v1261
    %v1387 = vunpack.c.l.b16 %v1262
    %v1388 = vunpack.c.h.b16 %v1262
    %v1389 = vunpack.c.l.b16 %v1263
    %v1390 = vunpack.c.h.b16 %v1263
    %v1391 = vunpack.c.l.b16 %v1264
    %v1392 = vunpack.c.h.b16 %v1264
    %v1393 = vunpack.c.l.b16 %v1265
    %v1394 = vunpack.c.h.b16 %v1265
    %v1395 = vunpack.c.l.b16 %v1266
    %v1396 = vunpack.c.h.b16 %v1266
    %v1397 = vunpack.c.l.b16 %v1267
    %v1398 = vunpack.c.h.b16 %v1267
    %v1399 = vunpack.c.l.b16 %v1268
    %v1400 = vunpack.c.h.b16 %v1268
    %v1401 = vunpack.c.l.b16 %v1269
    %v1402 = vunpack.c.h.b16 %v1269
    %v1403 = vunpack.c.l.b16 %v1270
    %v1404 = vunpack.c.h.b16 %v1270
    %v1405 = vunpack.c.l.b16 %v1271
    %v1406 = vunpack.c.h.b16 %v1271
    %v1407 = vunpack.c.l.b16 %v1272
    %v1408 = vunpack.c.h.b16 %v1272
    %v1409 = vunpack.c.l.b16 %v1273
    %v1410 = vunpack.c.h.b16 %v1273
    %v1411 = vunpack.c.l.b16 %v1274
    %v1412 = vunpack.c.h.b16 %v1274
    %v1413 = vunpack.c.l.b16 %v1275
    %v1414 = vunpack.c.h.b16 %v1275
    %v1415 = vunpack.c.l.b16 %v1276
    %v1416 = vunpack.c.h.b16 %v1276
    %v1417 = vunpack.c.l.b16 %v1277
    %v1418 = vunpack.c.h.b16 %v1277
    %v1419 = vunpack.c.l.b16 %v1278
    %v1420 = vunpack.c.h.b16 %v1278
    %v1421 = vunpack.c.l.b16 %v1279
    %v1422 = vunpack.c.h.b16 %v1279
    %v1423 = vunpack.c.l.b16 %v1280
    %v1424 = vunpack.c.h.b16 %v1280
    %v1425 = vunpack.c.l.b16 %v1281
    %v1426 = vunpack.c.h.b16 %v1281
    %v1427 = vunpack.c.l.b16 %v1282
    %v1428 = vunpack.c.h.b16 %v1282
    %v1429 = vunpack.c.l.b16 %v1283
    %v1430 = vunpack.c.h.b16 %v1283
    %v1431 = vunpack.c.l.b16 %v1284
    %v1432 = vunpack.c.h.b16 %v1284
    %v1433 = vunpack.c.l.b16 %v1285
    %v1434 = vunpack.c.h.b16 %v1285
    %v1435 = vunpack.c.l.b16 %v1286
    %v1436 = vunpack.c.h.b16 %v1286
    %v1437 = vunpack.c.l.b16 %v1287
    %v1438 = vunpack.c.h.b16 %v1287
    %v1439 = vunpack.c.l.b16 %v1288
    %v1440 = vunpack.c.h.b16 %v1288
    %v1441 = vunpack.c.l.b16 %v1289
    %v1442 = vunpack.c.h.b16 %v1289
    %v1443 = vunpack.c.l.b16 %v1290
    %v1444 = vunpack.c.h.b16 %v1290
    %v1445 = vunpack.c.l.b16 %v1291
    %v1446 = vunpack.c.h.b16 %v1291
    %v1447 = vpack.c.b16 %v1353, %v1351
    %v1448 = vpack.c.b16 %v1354, %v1352
    %v1449 = vpack.c.b16 %v1357, %v1355
    %v1450 = vpack.c.b16 %v1358, %v1356
    %v1451 = vpack.c.b16 %v1361, %v1359
    %v1452 = vpack.c.b16 %v1362, %v1360
    %v1453 = vpack.c.b16 %v1365, %v1363
    %v1454 = vpack.c.b16 %v1366, %v1364
    %v1455 = vpack.c.b16 %v1369, %v1367
    %v1456 = vpack.c.b16 %v1370, %v1368
    %v1457 = vpack.c.b16 %v1373, %v1371
    %v1458 = vpack.c.b16 %v1374, %v1372
    %v1459 = vpack.c.b16 %v1377, %v1375
    %v1460 = vpack.c.b16 %v1378, %v1376
    %v1461 = vpack.c.b16 %v1381, %v1379
    %v1462 = vpack.c.b16 %v1382, %v1380
    %v1463 = vpack.c.b16 %v1385, %v1383
    %v1464 = vpack.c.b16 %v1386, %v1384
    %v1465 = vpack.c.b16 %v1389, %v1387
    %v1466 = vpack.c.b16 %v1390, %v1388
    %v1467 = vpack.c.b16 %v1393, %v1391
    %v1468 = vpack.c.b16 %v1394, %v1392
    %v1469 = vpack.c.b16 %v1397, %v1395
    %v1470 = vpack.c.b16 %v1398, %v1396
    %v1471 = vpack.c.b16 %v1401, %v1399
    %v1472 = vpack.c.b16 %v1402, %v1400
    %v1473 = vpack.c.b16 %v1405, %v1403
    %v1474 = vpack.c.b16 %v1406, %v1404
    %v1475 = vpack.c.b16 %v1409, %v1407
    %v1476 = vpack.c.b16 %v1410, %v1408
    %v1477 = vpack.c.b16 %v1413, %v1411
    %v1478 = vpack.c.b16 %v1414, %v1412
    %v1479 = vpack.c.b16 %v1417, %v1415
    %v1480 = vpack.c.b16 %v1418, %v1416
    %v1481 = vpack.c.b16 %v1421, %v1419
    %v1482 = vpack.c.b16 %v1422, %v1420
    %v1483 = vpack.c.b16 %v1425, %v1423
    %v1484 = vpack.c.b16 %v1426, %v1424
    %v1485 = vpack.c.b16 %v1429, %v1427
    %v1486 = vpack.c.b16 %v1430, %v1428
    %v1487 = vpack.c.b16 %v1433, %v1431
    %v1488 = vpack.c.b16 %v1434, %v1432
    %v1489 = vpack.c.b16 %v1437, %v1435
    %v1490 = vpack.c.b16 %v1438, %v1436
    %v1491 = vpack.c.b16 %v1441, %v1439
    %v1492 = vpack.c.b16 %v1442, %v1440
    %v1493 = vpack.c.b16 %v1445, %v1443
    %v1494 = vpack.c.b16 %v1446, %v1444
    %1543 = vmatprep.subr.bf16.mxu0 %v1448
    %1544 = vmatpush1.bf16.msra.mxu0 %v1447
    %1545 = vmatprep.subr.bf16.mxu0 %v1450
    %1546 = vmatpush1.bf16.msra.mxu0 %v1449
    %1547 = vmatprep.subr.bf16.mxu0 %v1452
    %1548 = vmatpush1.bf16.msra.mxu0 %v1451
    %1549 = vmatprep.subr.bf16.mxu0 %v1454
    %1550 = vmatpush1.bf16.msra.mxu0 %v1453
    %1551 = vmatprep.subr.bf16.mxu0 %v1456
    %1552 = vmatpush1.bf16.msra.mxu0 %v1455
    %1553 = vmatprep.subr.bf16.mxu0 %v1458
    %1554 = vmatpush1.bf16.msra.mxu0 %v1457
    %1555 = vmatprep.subr.bf16.mxu0 %v1460
    %1556 = vmatpush1.bf16.msra.mxu0 %v1459
    %1557 = vmatprep.subr.bf16.mxu0 %v1462
    %1558 = vmatpush1.bf16.msra.mxu0 %v1461
    %1559 = vmatprep.subr.bf16.mxu0 %v1464
    %1560 = vmatpush1.bf16.msra.mxu0 %v1463
    %1561 = vmatprep.subr.bf16.mxu0 %v1466
    %1562 = vmatpush1.bf16.msra.mxu0 %v1465
    %1563 = vmatprep.subr.bf16.mxu0 %v1468
    %1564 = vmatpush1.bf16.msra.mxu0 %v1467
    %1565 = vmatprep.subr.bf16.mxu0 %v1470
    %1566 = vmatpush1.bf16.msra.mxu0 %v1469
    %1567 = vmatprep.subr.bf16.mxu0 %v1472
    %1568 = vmatpush1.bf16.msra.mxu0 %v1471
    %1569 = vmatprep.subr.bf16.mxu0 %v1474
    %1570 = vmatpush1.bf16.msra.mxu0 %v1473
    %1571 = vmatprep.subr.bf16.mxu0 %v1476
    %1572 = vmatpush1.bf16.msra.mxu0 %v1475
    %1573 = vmatprep.subr.bf16.mxu0 %v1478
    %1574 = vmatpush1.bf16.msra.mxu0 %v1477
    %1575 = vmatprep.mubr.bf16.mxu0 %v547
    %1576 = vmatmul.mubr.bf16.gmra.mrb[0].mxu0 %v1243
    %v1577 = vpop.f32.mrb[0].mxu0
    %v1578 = vadd.f32 %v1296, %v1577
    %v1579 = vpop.f32.mrb[0].mxu0
    %v1580 = vadd.f32 %v1300, %v1579
    %v1581 = vpop.f32.mrb[0].mxu0
    %v1582 = vpop.f32.mrb[0].mxu0
    %1583 = vdwg.mxu0
    %1584 = vmatprep.subr.bf16.mxu0 %v1480
    %1585 = vmatpush1.bf16.msra.mxu0 %v1479
    %1586 = vmatprep.subr.bf16.mxu0 %v1482
    %1587 = vmatpush1.bf16.msra.mxu0 %v1481
    %1588 = vmatprep.subr.bf16.mxu0 %v1484
    %1589 = vmatpush1.bf16.msra.mxu0 %v1483
    %1590 = vmatprep.subr.bf16.mxu0 %v1486
    %1591 = vmatpush1.bf16.msra.mxu0 %v1485
    %1592 = vmatprep.subr.bf16.mxu0 %v1488
    %1593 = vmatpush1.bf16.msra.mxu0 %v1487
    %1594 = vmatprep.subr.bf16.mxu0 %v1490
    %1595 = vmatpush1.bf16.msra.mxu0 %v1489
    %1596 = vmatprep.subr.bf16.mxu0 %v1492
    %1597 = vmatpush1.bf16.msra.mxu0 %v1491
    %1598 = vmatprep.subr.bf16.mxu0 %v1494
    %1599 = vmatpush1.bf16.msra.mxu0 %v1493
    %1600 = vmatprep.subr.bf16.mxu0 0
    %1601 = vmatpush1.bf16.msra.mxu0 0
    %1602 = vmatprep.subr.bf16.mxu0 0
    %1603 = vmatpush1.bf16.msra.mxu0 0
    %1604 = vmatprep.subr.bf16.mxu0 0
    %1605 = vmatpush1.bf16.msra.mxu0 0
    %1606 = vmatprep.subr.bf16.mxu0 0
    %1607 = vmatpush1.bf16.msra.mxu0 0
    %1608 = vmatprep.subr.bf16.mxu0 0
    %1609 = vmatpush1.bf16.msra.mxu0 0
    %1610 = vmatprep.subr.bf16.mxu0 0
    %1611 = vmatpush1.bf16.msra.mxu0 0
    %1612 = vmatprep.subr.bf16.mxu0 0
    %1613 = vmatpush1.bf16.msra.mxu0 0
    %1614 = vmatprep.subr.bf16.mxu0 0
    %1615 = vmatpush1.bf16.msra.mxu0 0
    %1616 = vmatprep.mubr.bf16.mxu0 0
    %1617 = vmatmul.mubr.bf16.gmra.mrb[0].mxu0 %v546
    %v1618 = vpop.f32.mrb[0].mxu0
    %v1619 = vadd.f32 %v1578, %v1618
    %v1620 = vpop.f32.mrb[0].mxu0
    %v1621 = vadd.f32 %v1580, %v1620
    %v1622 = vpop.f32.mrb[0].mxu0
    %v1623 = vpop.f32.mrb[0].mxu0
    %1624 = vdwg.mxu0
    %v1625 = vmax.f32 %v1619, %v1621
    %1626 = vmax.xlane.f32.xlu0 %v1625
    %v1627 = vpop.xlane.xlu0 %1626
    %v1628 = vsub.f32 %v1619, %v1627
    %v1629 = vsub.f32 %v1621, %v1627
    %v1630 = vmul.f32 %v1628, 1.442695
    %v1631 = vpow.pop %v1630
    %v1632 = vmul.f32 %v1629, 1.442695
    %v1633 = vpow.pop %v1632
    %v1634 = vadd.f32 %v1631, %v1633
    %1635 = vadd.xlane.f32.xlu0 %v1634
    %v1636 = vpop.xlane.xlu0 %1635
    %v1637 = vrcp.pop %v1636
    %v1638 = vmul.f32 %v1631, %v1637
    %v1639 = vmul.f32 %v1633, %v1637
    %1640 = vst [vmem:[#allocation10] sm:$0xff] %v1638
    %1641 = vst [vmem:[#allocation10 + $0x8] sm:$0xff] %v1639
    %1642 = vst [vmem:[%s9] sm:$0xff] %v1242
    // Predicated region
    $region50: #{_attn_decoder_forward.1} parent=1 // pred_check
      _
    $region51: #{_attn_decoder_forward.1} parent=1 // pred_check_branch
      %1644 = sbr.rel (0) target = $region53
    $region52: #{_attn_decoder_forward.1} parent=1 // pred_region
      %s1646 = ssub.s32 256, 256
      %1647 = vsyncadd [#allocation4], %s1646
      %s1649 = sshll.u32 [#allocation10], 4
      %s1650 = int_to_ptr.vmem [resolvable:$true] %s1649
      %1652 = dma.vmem_to_hbm [thread:$0]  %s1650, 256, %s8, [#allocation4]
    $region53: #{_attn_decoder_forward.1} parent=1 // pred_fallthru
      _
    // Predicated region
    $region54: #{_attn_decoder_forward.1} parent=1 // pred_check
      _
    $region55: #{_attn_decoder_forward.1} parent=1 // pred_check_branch
      %1654 = sbr.rel (0) target = $region57
    $region56: #{_attn_decoder_forward.1} parent=1 // pred_region
      _
    $region57: #{_attn_decoder_forward.1} parent=1 // pred_fallthru
      _
    // Predicated region
    $region58: #{_attn_decoder_forward.1} parent=1 // pred_check
      _
    $region59: #{_attn_decoder_forward.1} parent=1 // pred_check_branch
      %1656 = sbr.rel (0) target = $region61
    $region60: #{_attn_decoder_forward.1} parent=1 // pred_region
      %1657 = dma.done [#allocation4], 256
    $region61: #{_attn_decoder_forward.1} parent=1 // pred_fallthru
      _
    // Predicated region
    $region62: #{_attn_decoder_forward.1} parent=1 // pred_check
      _
    $region63: #{_attn_decoder_forward.1} parent=1 // pred_check_branch
      %1659 = sbr.rel (0) target = $region65
    $region64: #{_attn_decoder_forward.1} parent=1 // pred_region
      _
    $region65: #{_attn_decoder_forward.1} parent=1 // pred_fallthru
      _
    %1660 = vsyncpa [#allocation3], 1
    %1661 = vsyncpa [#allocation6], 1
    %1662 = vsyncpa [#allocation9], 1
    %1663 = vsyncpa [#allocation4], 1

</llo_original>
